<compile_context>
chip_gen: v6e
topology: v6e:2x2x1
jax: 0.10.0
libtpu: 0.0.40
codegen_flags: <defaults>
</compile_context>

<pallas_src>
import jax
import jax.numpy as jnp
from jax import lax
from jax.experimental import pallas as pl
from jax.experimental.pallas import tpu as pltpu


def _ceil_to(x, m):
    return -(-x // m) * m


# ----------------------------------------------------------------------------
# Fused kernel: attention sequence pooling + DNN tower + PredictionLayer
# ----------------------------------------------------------------------------
def din_fused_kernel(klen_ref,                    # [TB, 1] int32
                     k_ref,                       # [TB, T, E]   history keys
                     qud_ref,                     # [TB, E+Eu+Dd] (query|user|dense)
                     wq_ref, wk_ref, wp_ref,      # [E, H1] each (folded att layer 1)
                     ab1_ref,                     # [1, H1]
                     aw2_ref, ab2_ref,            # [H1, H2], [1, H2]
                     aw3t_ref, ab3_ref,           # [1, H2],  [1, 1]
                     wqud_ref, whist_ref,         # [E+Eu+Dd, D1], [E, D1]
                     db1_ref,                     # [1, D1]
                     dw2_ref, db2_ref,            # [D1, D2], [1, D2]
                     dw3t_ref, pb_ref,            # [1, D2],  [1, 1]
                     out_ref):                    # [1, 8, TB] lane-dense output
    TB, T, E = k_ref.shape
    H1 = wq_ref.shape[1]
    f32 = jnp.float32

    qud = qud_ref[...]                            # [TB, Ecat]
    q = qud[:, 0:E]                               # [TB, E]  candidate item emb
    keys3 = k_ref[...]                            # [TB, T, E]
    keys2 = keys3.reshape(TB * T, E)              # fold (TB,T) into sublanes
    prod2 = (keys3 * q[:, None, :]).reshape(TB * T, E)   # q*k term (VPU only)

    # --- LocalActivationUnit layer 1: folded weights, q-term hoisted out of T.
    q_term = jnp.dot(q, wq_ref[...], preferred_element_type=f32)        # [TB, H1]
    h = (jnp.dot(keys2, wk_ref[...], preferred_element_type=f32)
         + jnp.dot(prod2, wp_ref[...], preferred_element_type=f32)
         + jnp.broadcast_to(q_term[:, None, :], (TB, T, H1)).reshape(TB * T, H1)
         + ab1_ref[...])
    h = h * jax.nn.sigmoid(h)                     # Dice (eval: BN=id, alpha=0)

    h = (jnp.dot(h.astype(aw2_ref.dtype), aw2_ref[...],
                 preferred_element_type=f32) + ab2_ref[...])
    h = h * jax.nn.sigmoid(h)                     # Dice

    # att layer 3 has N=1 -> VPU multiply + lane reduction (keep it off the MXU).
    score = jnp.sum(h * aw3t_ref[...], axis=-1, keepdims=True) + ab3_ref[...]  # [TB*T,1]

    # Weighted history sum with padding mask (weight_normalization=False -> 0).
    weighted3 = (score * keys2).reshape(TB, T, E)
    t_pos = lax.broadcasted_iota(jnp.int32, (TB, T, E), 1)
    klen = klen_ref[...]                          # [TB, 1]
    weighted3 = jnp.where(t_pos < klen[:, :, None], weighted3, 0.0)
    hist = jnp.sum(weighted3, axis=1)             # [TB, E] -- stays in VMEM

    # --- Top DNN tower: dnn_input = cat([q, user, hist, dense]) @ dnn_w1,
    #     computed as (q|user|dense) @ W_qud  +  hist @ W_hist  (row split).
    z = (jnp.dot(qud, wqud_ref[...], preferred_element_type=f32)
         + jnp.dot(hist.astype(whist_ref.dtype), whist_ref[...],
                   preferred_element_type=f32)
         + db1_ref[...])
    z = jnp.maximum(z, 0.0)                       # relu
    z = jnp.maximum(jnp.dot(z.astype(dw2_ref.dtype), dw2_ref[...],
                            preferred_element_type=f32) + db2_ref[...], 0.0)

    # dnn_linear (no bias, N=1) -> VPU multiply + lane reduce; + pred bias.
    logit = jnp.sum(z * dw3t_ref[...], axis=-1, keepdims=True) + pb_ref[...]   # [TB,1]
    sig_row = jnp.transpose(jax.nn.sigmoid(logit))            # [1, TB] lane-dense
    out_ref[...] = jnp.broadcast_to(sig_row[:, None, :], (1, 8, TB))


# ----------------------------------------------------------------------------
# Wrapper: weight folding / layout plumbing + pallas_call
# ----------------------------------------------------------------------------
def din_fused(p, query_emb, keys_emb, user_emb, dense, keys_length, *,
              block_b=512, compute_dtype=jnp.float32):
    """query_emb [B,E], keys_emb [B,T,E], user_emb [B,Eu], dense [B,Dd],
    keys_length [B] -> y_pred [B,1]."""
    B, T, E = keys_emb.shape
    Eu = user_emb.shape[1]
    Dd = dense.shape[1]
    H1 = p["att_w1"].shape[1]
    H2 = p["att_w2"].shape[1]
    D1 = p["dnn_w1"].shape[1]
    D2 = p["dnn_w2"].shape[1]
    Ecat = E + Eu + Dd
    cd = compute_dtype
    f32 = jnp.float32

    # --- weight prep (pure algebra/layout, once per call, outside the kernel)
    w1 = p["att_w1"]
    w_q = (w1[0:E] + w1[2 * E:3 * E]).astype(cd)          # q-path (q and q-k terms)
    w_k = (w1[E:2 * E] - w1[2 * E:3 * E]).astype(cd)      # k-path
    w_p = w1[3 * E:4 * E].astype(cd)                      # (q*k)-path
    aw2 = p["att_w2"].astype(cd)
    aw3t = p["att_w3"].reshape(1, H2).astype(f32)         # stays on VPU -> keep f32
    dnn_w1 = p["dnn_w1"]
    w_qud = jnp.concatenate([dnn_w1[0:E + Eu], dnn_w1[E + Eu + E:]], axis=0).astype(cd)
    w_hist = dnn_w1[E + Eu:E + Eu + E].astype(cd)
    dw2 = p["dnn_w2"].astype(cd)
    dw3t = p["dnn_w3"].reshape(1, D2).astype(f32)

    # Fuse (query | user | dense) into one activation slab -> one DMA block.
    qud = jnp.concatenate(
        [query_emb, user_emb, dense.astype(query_emb.dtype)], axis=-1).astype(cd)
    keys_emb = keys_emb.astype(cd)

    # --- batch blocking: big blocks, but >=2 blocks when possible so the
    #     "parallel" grid axis keeps both v7x TensorCores busy.
    if B <= 16:
        TB = _ceil_to(B, 8)
    else:
        TB = min(_ceil_to(block_b, 8), _ceil_to(-(-B // 2), 8))
    B_pad = _ceil_to(B, TB)
    if B_pad != B:
        pad = B_pad - B
        qud = jnp.pad(qud, ((0, pad), (0, 0)))
        keys_emb = jnp.pad(keys_emb, ((0, pad), (0, 0), (0, 0)))
        keys_length = jnp.pad(keys_length, ((0, pad),))   # padded rows: klen=0
    klen = keys_length.astype(jnp.int32).reshape(B_pad, 1)
    grid_b = B_pad // TB

    const2 = lambda b: (0, 0)
    grid_spec = pltpu.PrefetchScalarGridSpec(
        num_scalar_prefetch=0,
        grid=(grid_b,),
        in_specs=[
            pl.BlockSpec((TB, 1), lambda b: (b, 0)),          # keys_length
            pl.BlockSpec((TB, T, E), lambda b: (b, 0, 0)),    # history keys
            pl.BlockSpec((TB, Ecat), lambda b: (b, 0)),       # query|user|dense
            # attention weights (constant index maps -> resident in VMEM)
            pl.BlockSpec((E, H1), const2),
            pl.BlockSpec((E, H1), const2),
            pl.BlockSpec((E, H1), const2),
            pl.BlockSpec((1, H1), const2),
            pl.BlockSpec((H1, H2), const2),
            pl.BlockSpec((1, H2), const2),
            pl.BlockSpec((1, H2), const2),
            pl.BlockSpec((1, 1), const2),
            # DNN weights
            pl.BlockSpec((Ecat, D1), const2),
            pl.BlockSpec((E, D1), const2),
            pl.BlockSpec((1, D1), const2),
            pl.BlockSpec((D1, D2), const2),
            pl.BlockSpec((1, D2), const2),
            pl.BlockSpec((1, D2), const2),
            pl.BlockSpec((1, 1), const2),
        ],
        out_specs=pl.BlockSpec((1, 8, TB), lambda b: (b, 0, 0)),
    )
    out = pl.pallas_call(
        din_fused_kernel,
        out_shape=jax.ShapeDtypeStruct((grid_b, 8, TB), jnp.float32),
        grid_spec=grid_spec,
        compiler_params=pltpu.CompilerParams(dimension_semantics=("parallel",)),
    )(klen, keys_emb, qud,
      w_q, w_k, w_p, p["att_b1"].astype(f32),
      aw2, p["att_b2"].astype(f32), aw3t, p["att_b3"].astype(f32),
      w_qud, w_hist, p["dnn_b1"].astype(f32),
      dw2, p["dnn_b2"].astype(f32), dw3t, p["pred_bias"].astype(f32))
    # lane-dense output: row 0 of each (8, TB) tile carries the predictions
    return out[:, 0, :].reshape(B_pad, 1)[:B]


# ----------------------------------------------------------------------------
# Full DIN forward (glue in plain JAX: embedding lookups only)
# ----------------------------------------------------------------------------
def din_forward(p, item_ids, user_ids, hist_ids, keys_length, dense, *,
                block_b=512, compute_dtype=jnp.float32):
    query_emb = p["item_table"][item_ids]             # [B, E]    candidate item
    keys_emb = p["item_table"][hist_ids]              # [B, T, E] shared embedding
    user_emb = p["user_table"][user_ids]              # [B, Eu]
    return din_fused(p, query_emb, keys_emb, user_emb,
                     dense.astype(jnp.float32), keys_length,
                     block_b=block_b, compute_dtype=compute_dtype)


# Pure-JAX reference used for the correctness check.
def din_reference(p, item_ids, user_ids, hist_ids, keys_length, dense):
    q = p["item_table"][item_ids][:, None, :]
    keys = p["item_table"][hist_ids]
    u = p["user_table"][user_ids]
    B, T, E = keys.shape
    queries = jnp.broadcast_to(q, keys.shape)
    att_in = jnp.concatenate([queries, keys, queries - keys, queries * keys], -1)
    h = att_in @ p["att_w1"] + p["att_b1"]
    h = h * jax.nn.sigmoid(h)
    h = h @ p["att_w2"] + p["att_b2"]
    h = h * jax.nn.sigmoid(h)
    score = h @ p["att_w3"] + p["att_b3"]             # [B,T,1]
    mask = (jnp.arange(T)[None, :] < keys_length[:, None])[..., None]
    score = jnp.where(mask, score, 0.0)
    hist = jnp.sum(score * keys, axis=1)              # [B,E]
    x = jnp.concatenate([q[:, 0], u, hist, dense.astype(jnp.float32)], -1)
    h = jnp.maximum(x @ p["dnn_w1"] + p["dnn_b1"], 0.0)
    h = jnp.maximum(h @ p["dnn_w2"] + p["dnn_b2"], 0.0)
    return jax.nn.sigmoid(h @ p["dnn_w3"] + p["pred_bias"])


# ----------------------------------------------------------------------------
# Parameter construction (deterministic, synthetic)
# ----------------------------------------------------------------------------
def make_params(key, *, E=8, E_user=8, vocab_item=20, vocab_user=10,
                dense_dim=2, att_hidden=(64, 16), dnn_hidden=(256, 128),
                init_std=0.1):
    ks = jax.random.split(key, 8)
    att_in = 4 * E
    dnn_in = E + E_user + E + dense_dim               # item + user + hist + dense
    f32 = jnp.float32
    return {
        "item_table": jax.random.normal(ks[0], (vocab_item, E), f32) * init_std,
        "user_table": jax.random.normal(ks[1], (vocab_user, E_user), f32) * init_std,
        # LocalActivationUnit MLP (att_hidden_units=(64,16), Dice) + final dense
        "att_w1": jax.random.normal(ks[2], (att_in, att_hidden[0]), f32) * init_std,
        "att_b1": jnp.zeros((1, att_hidden[0]), f32),
        "att_w2": jax.random.normal(ks[3], (att_hidden[0], att_hidden[1]), f32) * init_std,
        "att_b2": jnp.zeros((1, att_hidden[1]), f32),
        "att_w3": jax.random.normal(ks[4], (att_hidden[1], 1), f32) * init_std,
        "att_b3": jnp.zeros((1, 1), f32),
        # top DNN (256, 128) relu + dnn_linear (no bias) + PredictionLayer bias
        "dnn_w1": jax.random.normal(ks[5], (dnn_in, dnn_hidden[0]), f32) * init_std,
        "dnn_b1": jnp.zeros((1, dnn_hidden[0]), f32),
        "dnn_w2": jax.random.normal(ks[6], (dnn_hidden[0], dnn_hidden[1]), f32) * init_std,
        "dnn_b2": jnp.zeros((1, dnn_hidden[1]), f32),
        "dnn_w3": jax.random.normal(ks[7], (dnn_hidden[1], 1), f32) * init_std,
        "pred_bias": jnp.zeros((1, 1), f32),
    }


if __name__ == "__main__":
    B, T, E = 4, 8, 8
    key = jax.random.PRNGKey(0)
    kp, k1, k2, k3, k4, k5 = jax.random.split(key, 6)

    params = make_params(kp, E=E)

    item_ids = jax.random.randint(k1, (B,), 0, 20, dtype=jnp.int32)
    user_ids = jax.random.randint(k2, (B,), 0, 10, dtype=jnp.int32)
    hist_ids = jax.random.randint(k3, (B, T), 0, 20, dtype=jnp.int32)
    keys_length = jax.random.randint(k4, (B,), 1, T + 1, dtype=jnp.int32)
    dense = jax.random.normal(k5, (B, 2), jnp.float32)

    y = din_forward(params, item_ids, user_ids, hist_ids, keys_length, dense)
    y = jax.block_until_ready(y)

    y_ref = din_reference(params, item_ids, user_ids, hist_ids, keys_length, dense)
    assert y.shape == (B, 1)
    assert jnp.allclose(y, y_ref, atol=1e-5, rtol=1e-5), (y, y_ref)

    # TODO(synk): Dice is hard-coded to eval-mode BatchNorm (mean=0, var=1, alpha=0);
    # a trained PyTorch DIN with nontrivial BN stats/alpha would need those params.
    print("KERNEL_OK")
</pallas_src>

<mosaic_0001>
module attributes {stable_mosaic.version = 11 : i64} {
  func.func @din_fused_kernel(%arg0: i32, %arg1: memref<8x1xi32, #tpu.memory_space<vmem>>, %arg2: memref<8x8x8xf32, #tpu.memory_space<vmem>>, %arg3: memref<8x18xf32, #tpu.memory_space<vmem>>, %arg4: memref<8x64xf32, #tpu.memory_space<vmem>>, %arg5: memref<8x64xf32, #tpu.memory_space<vmem>>, %arg6: memref<8x64xf32, #tpu.memory_space<vmem>>, %arg7: memref<1x64xf32, #tpu.memory_space<vmem>>, %arg8: memref<64x16xf32, #tpu.memory_space<vmem>>, %arg9: memref<1x16xf32, #tpu.memory_space<vmem>>, %arg10: memref<1x16xf32, #tpu.memory_space<vmem>>, %arg11: memref<1x1xf32, #tpu.memory_space<vmem>>, %arg12: memref<18x256xf32, #tpu.memory_space<vmem>>, %arg13: memref<8x256xf32, #tpu.memory_space<vmem>>, %arg14: memref<1x256xf32, #tpu.memory_space<vmem>>, %arg15: memref<256x128xf32, #tpu.memory_space<vmem>>, %arg16: memref<1x128xf32, #tpu.memory_space<vmem>>, %arg17: memref<1x128xf32, #tpu.memory_space<vmem>>, %arg18: memref<1x1xf32, #tpu.memory_space<vmem>>, %arg19: memref<1x8x8xf32, #tpu.memory_space<vmem>>) attributes {dimension_semantics = [#tpu.dimension_semantics<parallel>], iteration_bounds = array<i64: 1>, scalar_prefetch = 0 : i64, scratch_operands = 0 : i64, tpu.core_type = #tpu.core_type<tc>, window_params = [{transform_indices = @transform_0, window_bounds = array<i64: 8, 1>}, {transform_indices = @transform_1, window_bounds = array<i64: 8, 8, 8>}, {transform_indices = @transform_2, window_bounds = array<i64: 8, 18>}, {pipeline_mode = #tpu.pipeline_mode<synchronous>, transform_indices = @transform_3, window_bounds = array<i64: 8, 64>}, {pipeline_mode = #tpu.pipeline_mode<synchronous>, transform_indices = @transform_4, window_bounds = array<i64: 8, 64>}, {pipeline_mode = #tpu.pipeline_mode<synchronous>, transform_indices = @transform_5, window_bounds = array<i64: 8, 64>}, {pipeline_mode = #tpu.pipeline_mode<synchronous>, transform_indices = @transform_6, window_bounds = array<i64: 1, 64>}, {pipeline_mode = #tpu.pipeline_mode<synchronous>, transform_indices = @transform_7, window_bounds = array<i64: 64, 16>}, {pipeline_mode = #tpu.pipeline_mode<synchronous>, transform_indices = @transform_8, window_bounds = array<i64: 1, 16>}, {pipeline_mode = #tpu.pipeline_mode<synchronous>, transform_indices = @transform_9, window_bounds = array<i64: 1, 16>}, {pipeline_mode = #tpu.pipeline_mode<synchronous>, transform_indices = @transform_10, window_bounds = array<i64: 1, 1>}, {pipeline_mode = #tpu.pipeline_mode<synchronous>, transform_indices = @transform_11, window_bounds = array<i64: 18, 256>}, {pipeline_mode = #tpu.pipeline_mode<synchronous>, transform_indices = @transform_12, window_bounds = array<i64: 8, 256>}, {pipeline_mode = #tpu.pipeline_mode<synchronous>, transform_indices = @transform_13, window_bounds = array<i64: 1, 256>}, {pipeline_mode = #tpu.pipeline_mode<synchronous>, transform_indices = @transform_14, window_bounds = array<i64: 256, 128>}, {pipeline_mode = #tpu.pipeline_mode<synchronous>, transform_indices = @transform_15, window_bounds = array<i64: 1, 128>}, {pipeline_mode = #tpu.pipeline_mode<synchronous>, transform_indices = @transform_16, window_bounds = array<i64: 1, 128>}, {pipeline_mode = #tpu.pipeline_mode<synchronous>, transform_indices = @transform_17, window_bounds = array<i64: 1, 1>}, {transform_indices = @transform_18, window_bounds = array<i64: 1, 8, 8>}]} {
    %c0 = arith.constant 0 : index
    %c0_0 = arith.constant 0 : index
    %0 = vector.load %arg3[%c0, %c0_0] : memref<8x18xf32, #tpu.memory_space<vmem>>, vector<8x18xf32>
    %1 = vector.extract_strided_slice %0 {offsets = [0, 0], sizes = [8, 8], strides = [1, 1]} : vector<8x18xf32> to vector<8x8xf32>
    %c0_1 = arith.constant 0 : index
    %c0_2 = arith.constant 0 : index
    %c0_3 = arith.constant 0 : index
    %2 = vector.load %arg2[%c0_1, %c0_2, %c0_3] : memref<8x8x8xf32, #tpu.memory_space<vmem>>, vector<8x8x8xf32>
    %3 = vector.shape_cast %2 : vector<8x8x8xf32> to vector<64x8xf32>
    %4 = vector.shape_cast %1 : vector<8x8xf32> to vector<8x1x8xf32>
    %5 = vector.broadcast %4 : vector<8x1x8xf32> to vector<8x8x8xf32>
    %6 = arith.mulf %2, %5 : vector<8x8x8xf32>
    %7 = vector.shape_cast %6 : vector<8x8x8xf32> to vector<64x8xf32>
    %c0_4 = arith.constant 0 : index
    %c0_5 = arith.constant 0 : index
    %8 = vector.load %arg4[%c0_4, %c0_5] : memref<8x64xf32, #tpu.memory_space<vmem>>, vector<8x64xf32>
    %cst = arith.constant dense<0.000000e+00> : vector<8x64xf32>
    %9 = tpu.matmul %1, %8, %cst {dimension_numbers = #tpu.dot_dimension_numbers<[1], [0], [0], [1], [0, 0, 1, 1], [], []>} : vector<8x8xf32>, vector<8x64xf32>, vector<8x64xf32> -> vector<8x64xf32>
    %c0_6 = arith.constant 0 : index
    %c0_7 = arith.constant 0 : index
    %10 = vector.load %arg5[%c0_6, %c0_7] : memref<8x64xf32, #tpu.memory_space<vmem>>, vector<8x64xf32>
    %cst_8 = arith.constant dense<0.000000e+00> : vector<64x64xf32>
    %11 = tpu.matmul %3, %10, %cst_8 {dimension_numbers = #tpu.dot_dimension_numbers<[1], [0], [0], [1], [0, 0, 1, 1], [], []>} : vector<64x8xf32>, vector<8x64xf32>, vector<64x64xf32> -> vector<64x64xf32>
    %c0_9 = arith.constant 0 : index
    %c0_10 = arith.constant 0 : index
    %12 = vector.load %arg6[%c0_9, %c0_10] : memref<8x64xf32, #tpu.memory_space<vmem>>, vector<8x64xf32>
    %cst_11 = arith.constant dense<0.000000e+00> : vector<64x64xf32>
    %13 = tpu.matmul %7, %12, %cst_11 {dimension_numbers = #tpu.dot_dimension_numbers<[1], [0], [0], [1], [0, 0, 1, 1], [], []>} : vector<64x8xf32>, vector<8x64xf32>, vector<64x64xf32> -> vector<64x64xf32>
    %14 = arith.addf %11, %13 : vector<64x64xf32>
    %15 = vector.shape_cast %9 : vector<8x64xf32> to vector<8x1x64xf32>
    %16 = vector.shape_cast %15 : vector<8x1x64xf32> to vector<8x1x64xf32>
    %17 = vector.broadcast %16 : vector<8x1x64xf32> to vector<8x8x64xf32>
    %18 = vector.shape_cast %17 : vector<8x8x64xf32> to vector<64x64xf32>
    %19 = arith.addf %14, %18 : vector<64x64xf32>
    %c0_12 = arith.constant 0 : index
    %c0_13 = arith.constant 0 : index
    %20 = vector.load %arg7[%c0_12, %c0_13] : memref<1x64xf32, #tpu.memory_space<vmem>>, vector<1x64xf32>
    %21 = vector.broadcast %20 : vector<1x64xf32> to vector<64x64xf32>
    %22 = arith.addf %19, %21 : vector<64x64xf32>
    %23 = arith.negf %22 : vector<64x64xf32>
    %24 = math.exp %23 : vector<64x64xf32>
    %cst_14 = arith.constant 1.000000e+00 : f32
    %25 = vector.broadcast %cst_14 : f32 to vector<64x64xf32>
    %26 = arith.addf %25, %24 : vector<64x64xf32>
    %27 = arith.divf %25, %26 : vector<64x64xf32>
    %28 = arith.mulf %22, %27 : vector<64x64xf32>
    %c0_15 = arith.constant 0 : index
    %c0_16 = arith.constant 0 : index
    %29 = vector.load %arg8[%c0_15, %c0_16] : memref<64x16xf32, #tpu.memory_space<vmem>>, vector<64x16xf32>
    %cst_17 = arith.constant dense<0.000000e+00> : vector<64x16xf32>
    %30 = tpu.matmul %28, %29, %cst_17 {dimension_numbers = #tpu.dot_dimension_numbers<[1], [0], [0], [1], [0, 0, 1, 1], [], []>} : vector<64x64xf32>, vector<64x16xf32>, vector<64x16xf32> -> vector<64x16xf32>
    %c0_18 = arith.constant 0 : index
    %c0_19 = arith.constant 0 : index
    %31 = vector.load %arg9[%c0_18, %c0_19] : memref<1x16xf32, #tpu.memory_space<vmem>>, vector<1x16xf32>
    %32 = vector.broadcast %31 : vector<1x16xf32> to vector<64x16xf32>
    %33 = arith.addf %30, %32 : vector<64x16xf32>
    %34 = arith.negf %33 : vector<64x16xf32>
    %35 = math.exp %34 : vector<64x16xf32>
    %cst_20 = arith.constant 1.000000e+00 : f32
    %36 = vector.broadcast %cst_20 : f32 to vector<64x16xf32>
    %37 = arith.addf %36, %35 : vector<64x16xf32>
    %38 = arith.divf %36, %37 : vector<64x16xf32>
    %39 = arith.mulf %33, %38 : vector<64x16xf32>
    %c0_21 = arith.constant 0 : index
    %c0_22 = arith.constant 0 : index
    %40 = vector.load %arg10[%c0_21, %c0_22] : memref<1x16xf32, #tpu.memory_space<vmem>>, vector<1x16xf32>
    %41 = vector.broadcast %40 : vector<1x16xf32> to vector<64x16xf32>
    %42 = arith.mulf %39, %41 : vector<64x16xf32>
    %cst_23 = arith.constant dense<0.000000e+00> : vector<64xf32>
    %43 = vector.multi_reduction <add>, %42, %cst_23 [1] : vector<64x16xf32> to vector<64xf32>
    %44 = vector.shape_cast %43 : vector<64xf32> to vector<64x1xf32>
    %c0_24 = arith.constant 0 : index
    %c0_25 = arith.constant 0 : index
    %45 = vector.load %arg11[%c0_24, %c0_25] : memref<1x1xf32, #tpu.memory_space<vmem>>, vector<1x1xf32>
    %46 = vector.broadcast %45 : vector<1x1xf32> to vector<64x1xf32>
    %47 = arith.addf %44, %46 : vector<64x1xf32>
    %48 = vector.broadcast %47 : vector<64x1xf32> to vector<64x8xf32>
    %49 = arith.mulf %48, %3 : vector<64x8xf32>
    %50 = vector.shape_cast %49 : vector<64x8xf32> to vector<8x8x8xf32>
    %51 = tpu.iota {dimensions = array<i32: 1>} : vector<8x8x8xi32>
    %c0_26 = arith.constant 0 : index
    %c0_27 = arith.constant 0 : index
    %52 = vector.load %arg1[%c0_26, %c0_27] : memref<8x1xi32, #tpu.memory_space<vmem>>, vector<8x1xi32>
    %53 = vector.shape_cast %52 : vector<8x1xi32> to vector<8x1x1xi32>
    %54 = vector.broadcast %53 : vector<8x1x1xi32> to vector<8x8x8xi32>
    %55 = arith.cmpi slt, %51, %54 : vector<8x8x8xi32>
    %cst_28 = arith.constant 0.000000e+00 : f32
    %56 = vector.broadcast %cst_28 : f32 to vector<8x8x8xf32>
    %57 = arith.select %55, %50, %56 : vector<8x8x8xi1>, vector<8x8x8xf32>
    %cst_29 = arith.constant dense<0.000000e+00> : vector<8x8xf32>
    %58 = vector.multi_reduction <add>, %57, %cst_29 [1] : vector<8x8x8xf32> to vector<8x8xf32>
    %c0_30 = arith.constant 0 : index
    %c0_31 = arith.constant 0 : index
    %59 = vector.load %arg12[%c0_30, %c0_31] : memref<18x256xf32, #tpu.memory_space<vmem>>, vector<18x256xf32>
    %cst_32 = arith.constant dense<0.000000e+00> : vector<8x256xf32>
    %60 = tpu.matmul %0, %59, %cst_32 {dimension_numbers = #tpu.dot_dimension_numbers<[1], [0], [0], [1], [0, 0, 1, 1], [], []>} : vector<8x18xf32>, vector<18x256xf32>, vector<8x256xf32> -> vector<8x256xf32>
    %c0_33 = arith.constant 0 : index
    %c0_34 = arith.constant 0 : index
    %61 = vector.load %arg13[%c0_33, %c0_34] : memref<8x256xf32, #tpu.memory_space<vmem>>, vector<8x256xf32>
    %cst_35 = arith.constant dense<0.000000e+00> : vector<8x256xf32>
    %62 = tpu.matmul %58, %61, %cst_35 {dimension_numbers = #tpu.dot_dimension_numbers<[1], [0], [0], [1], [0, 0, 1, 1], [], []>} : vector<8x8xf32>, vector<8x256xf32>, vector<8x256xf32> -> vector<8x256xf32>
    %63 = arith.addf %60, %62 : vector<8x256xf32>
    %c0_36 = arith.constant 0 : index
    %c0_37 = arith.constant 0 : index
    %64 = vector.load %arg14[%c0_36, %c0_37] : memref<1x256xf32, #tpu.memory_space<vmem>>, vector<1x256xf32>
    %65 = vector.broadcast %64 : vector<1x256xf32> to vector<8x256xf32>
    %66 = arith.addf %63, %65 : vector<8x256xf32>
    %cst_38 = arith.constant 0.000000e+00 : f32
    %67 = vector.broadcast %cst_38 : f32 to vector<8x256xf32>
    %68 = arith.maximumf %66, %67 : vector<8x256xf32>
    %c0_39 = arith.constant 0 : index
    %c0_40 = arith.constant 0 : index
    %69 = vector.load %arg15[%c0_39, %c0_40] : memref<256x128xf32, #tpu.memory_space<vmem>>, vector<256x128xf32>
    %cst_41 = arith.constant dense<0.000000e+00> : vector<8x128xf32>
    %70 = tpu.matmul %68, %69, %cst_41 {dimension_numbers = #tpu.dot_dimension_numbers<[1], [0], [0], [1], [0, 0, 1, 1], [], []>} : vector<8x256xf32>, vector<256x128xf32>, vector<8x128xf32> -> vector<8x128xf32>
    %c0_42 = arith.constant 0 : index
    %c0_43 = arith.constant 0 : index
    %71 = vector.load %arg16[%c0_42, %c0_43] : memref<1x128xf32, #tpu.memory_space<vmem>>, vector<1x128xf32>
    %72 = vector.broadcast %71 : vector<1x128xf32> to vector<8x128xf32>
    %73 = arith.addf %70, %72 : vector<8x128xf32>
    %cst_44 = arith.constant 0.000000e+00 : f32
    %74 = vector.broadcast %cst_44 : f32 to vector<8x128xf32>
    %75 = arith.maximumf %73, %74 : vector<8x128xf32>
    %c0_45 = arith.constant 0 : index
    %c0_46 = arith.constant 0 : index
    %76 = vector.load %arg17[%c0_45, %c0_46] : memref<1x128xf32, #tpu.memory_space<vmem>>, vector<1x128xf32>
    %77 = vector.broadcast %76 : vector<1x128xf32> to vector<8x128xf32>
    %78 = arith.mulf %75, %77 : vector<8x128xf32>
    %cst_47 = arith.constant dense<0.000000e+00> : vector<8xf32>
    %79 = vector.multi_reduction <add>, %78, %cst_47 [1] : vector<8x128xf32> to vector<8xf32>
    %80 = vector.shape_cast %79 : vector<8xf32> to vector<8x1xf32>
    %c0_48 = arith.constant 0 : index
    %c0_49 = arith.constant 0 : index
    %81 = vector.load %arg18[%c0_48, %c0_49] : memref<1x1xf32, #tpu.memory_space<vmem>>, vector<1x1xf32>
    %82 = vector.broadcast %81 : vector<1x1xf32> to vector<8x1xf32>
    %83 = arith.addf %80, %82 : vector<8x1xf32>
    %84 = arith.negf %83 : vector<8x1xf32>
    %85 = math.exp %84 : vector<8x1xf32>
    %cst_50 = arith.constant 1.000000e+00 : f32
    %86 = vector.broadcast %cst_50 : f32 to vector<8x1xf32>
    %87 = arith.addf %86, %85 : vector<8x1xf32>
    %88 = arith.divf %86, %87 : vector<8x1xf32>
    %89 = tpu.transpose %88, [1, 0] : vector<8x1xf32> -> vector<1x8xf32>
    %90 = vector.shape_cast %89 : vector<1x8xf32> to vector<1x1x8xf32>
    %91 = vector.shape_cast %90 : vector<1x1x8xf32> to vector<1x1x8xf32>
    %92 = vector.broadcast %91 : vector<1x1x8xf32> to vector<1x8x8xf32>
    %c0_51 = arith.constant 0 : index
    %c0_52 = arith.constant 0 : index
    %c0_53 = arith.constant 0 : index
    %93 = vector.load %arg19[%c0_51, %c0_52, %c0_53] : memref<1x8x8xf32, #tpu.memory_space<vmem>>, vector<1x8x8xf32>
    tpu.vector_store %arg19[%c0_51, %c0_52, %c0_53], %92 {strides = array<i32>} : memref<1x8x8xf32, #tpu.memory_space<vmem>>, vector<1x8x8xf32>,
    return
  }
  func.func @transform_0(%arg0: i32) -> (i32, i32) {
    %c0_i32 = arith.constant 0 : i32
    %c0_i32_0 = arith.constant 0 : i32
    return %arg0, %c0_i32 : i32, i32
  }
  func.func @transform_1(%arg0: i32) -> (i32, i32, i32) {
    %c0_i32 = arith.constant 0 : i32
    %c0_i32_0 = arith.constant 0 : i32
    %c0_i32_1 = arith.constant 0 : i32
    return %arg0, %c0_i32, %c0_i32_0 : i32, i32, i32
  }
  func.func @transform_2(%arg0: i32) -> (i32, i32) {
    %c0_i32 = arith.constant 0 : i32
    %c0_i32_0 = arith.constant 0 : i32
    return %arg0, %c0_i32 : i32, i32
  }
  func.func @transform_3(%arg0: i32) -> (i32, i32) {
    %c0_i32 = arith.constant 0 : i32
    %c0_i32_0 = arith.constant 0 : i32
    %c0_i32_1 = arith.constant 0 : i32
    return %c0_i32, %c0_i32_0 : i32, i32
  }
  func.func @transform_4(%arg0: i32) -> (i32, i32) {
    %c0_i32 = arith.constant 0 : i32
    %c0_i32_0 = arith.constant 0 : i32
    %c0_i32_1 = arith.constant 0 : i32
    return %c0_i32, %c0_i32_0 : i32, i32
  }
  func.func @transform_5(%arg0: i32) -> (i32, i32) {
    %c0_i32 = arith.constant 0 : i32
    %c0_i32_0 = arith.constant 0 : i32
    %c0_i32_1 = arith.constant 0 : i32
    return %c0_i32, %c0_i32_0 : i32, i32
  }
  func.func @transform_6(%arg0: i32) -> (i32, i32) {
    %c0_i32 = arith.constant 0 : i32
    %c0_i32_0 = arith.constant 0 : i32
    %c0_i32_1 = arith.constant 0 : i32
    return %c0_i32, %c0_i32_0 : i32, i32
  }
  func.func @transform_7(%arg0: i32) -> (i32, i32) {
    %c0_i32 = arith.constant 0 : i32
    %c0_i32_0 = arith.constant 0 : i32
    %c0_i32_1 = arith.constant 0 : i32
    return %c0_i32, %c0_i32_0 : i32, i32
  }
  func.func @transform_8(%arg0: i32) -> (i32, i32) {
    %c0_i32 = arith.constant 0 : i32
    %c0_i32_0 = arith.constant 0 : i32
    %c0_i32_1 = arith.constant 0 : i32
    return %c0_i32, %c0_i32_0 : i32, i32
  }
  func.func @transform_9(%arg0: i32) -> (i32, i32) {
    %c0_i32 = arith.constant 0 : i32
    %c0_i32_0 = arith.constant 0 : i32
    %c0_i32_1 = arith.constant 0 : i32
    return %c0_i32, %c0_i32_0 : i32, i32
  }
  func.func @transform_10(%arg0: i32) -> (i32, i32) {
    %c0_i32 = arith.constant 0 : i32
    %c0_i32_0 = arith.constant 0 : i32
    %c0_i32_1 = arith.constant 0 : i32
    return %c0_i32, %c0_i32_0 : i32, i32
  }
  func.func @transform_11(%arg0: i32) -> (i32, i32) {
    %c0_i32 = arith.constant 0 : i32
    %c0_i32_0 = arith.constant 0 : i32
    %c0_i32_1 = arith.constant 0 : i32
    return %c0_i32, %c0_i32_0 : i32, i32
  }
  func.func @transform_12(%arg0: i32) -> (i32, i32) {
    %c0_i32 = arith.constant 0 : i32
    %c0_i32_0 = arith.constant 0 : i32
    %c0_i32_1 = arith.constant 0 : i32
    return %c0_i32, %c0_i32_0 : i32, i32
  }
  func.func @transform_13(%arg0: i32) -> (i32, i32) {
    %c0_i32 = arith.constant 0 : i32
    %c0_i32_0 = arith.constant 0 : i32
    %c0_i32_1 = arith.constant 0 : i32
    return %c0_i32, %c0_i32_0 : i32, i32
  }
  func.func @transform_14(%arg0: i32) -> (i32, i32) {
    %c0_i32 = arith.constant 0 : i32
    %c0_i32_0 = arith.constant 0 : i32
    %c0_i32_1 = arith.constant 0 : i32
    return %c0_i32, %c0_i32_0 : i32, i32
  }
  func.func @transform_15(%arg0: i32) -> (i32, i32) {
    %c0_i32 = arith.constant 0 : i32
    %c0_i32_0 = arith.constant 0 : i32
    %c0_i32_1 = arith.constant 0 : i32
    return %c0_i32, %c0_i32_0 : i32, i32
  }
  func.func @transform_16(%arg0: i32) -> (i32, i32) {
    %c0_i32 = arith.constant 0 : i32
    %c0_i32_0 = arith.constant 0 : i32
    %c0_i32_1 = arith.constant 0 : i32
    return %c0_i32, %c0_i32_0 : i32, i32
  }
  func.func @transform_17(%arg0: i32) -> (i32, i32) {
    %c0_i32 = arith.constant 0 : i32
    %c0_i32_0 = arith.constant 0 : i32
    %c0_i32_1 = arith.constant 0 : i32
    return %c0_i32, %c0_i32_0 : i32, i32
  }
  func.func @transform_18(%arg0: i32) -> (i32, i32, i32) {
    %c0_i32 = arith.constant 0 : i32
    %c0_i32_0 = arith.constant 0 : i32
    %c0_i32_1 = arith.constant 0 : i32
    return %arg0, %c0_i32, %c0_i32_0 : i32, i32, i32
  }
}

</mosaic_0001>

<llo_original>
// kernel: tpu_custom_call.1
$region0: #{tpu_custom_call.1}
  #allocation0 [shape = 'u32[]', space=smem, size = 0x4, offset = 0x4, fixed_abs, tag = 'smem constant byte address 0x4 - core index']
  #allocation1 [shape = 'u32[144,128]{1,0:T(1,128)}', space=vmem, size = 0x12000, scoped, tag = 'internal scratch']
  #allocation2 [shape = 'f32[1,1]{1,0:T(1,128)S(1)}', space=vmem, size = 0x200, scoped, tag = 'scoped memory for tpu_custom_call.1']
  #allocation3 [shape = 'f32[1,1]{1,0:T(1,128)S(1)}', space=vmem, size = 0x200, scoped, tag = 'scoped memory for tpu_custom_call.1']
  %s0 = inlined_call_operand.vmem [shape: s32[8,1], index: 0, kind: input, shape index: {}]
  %s1 = inlined_call_operand.vmem [shape: f32[8,8,8], index: 1, kind: input, shape index: {}]
  %s2 = inlined_call_operand.vmem [shape: f32[8,18], index: 2, kind: input, shape index: {}]
  %s3 = inlined_call_operand.hbm [shape: f32[8,64], index: 3, kind: input, shape index: {}]
  %s4 = inlined_call_operand.hbm [shape: f32[8,64], index: 4, kind: input, shape index: {}]
  %s5 = inlined_call_operand.hbm [shape: f32[8,64], index: 5, kind: input, shape index: {}]
  %s6 = inlined_call_operand.vmem [shape: f32[1,64], index: 6, kind: input, shape index: {}]
  %s7 = inlined_call_operand.vmem [shape: f32[64,16], index: 7, kind: input, shape index: {}]
  %s8 = inlined_call_operand.hbm [shape: f32[1,16], index: 8, kind: input, shape index: {}]
  %s9 = inlined_call_operand.vmem [shape: f32[1,16], index: 9, kind: input, shape index: {}]
  %s10 = inlined_call_operand.<no memory space> [shape: f32[1,1], index: 10, kind: input, shape index: {}]
  %s11 = inlined_call_operand.hbm [shape: f32[18,256], index: 11, kind: input, shape index: {}]
  %s12 = inlined_call_operand.vmem [shape: f32[8,256], index: 12, kind: input, shape index: {}]
  %s13 = inlined_call_operand.vmem [shape: f32[1,256], index: 13, kind: input, shape index: {}]
  %s14 = inlined_call_operand.hbm [shape: f32[256,128], index: 14, kind: input, shape index: {}]
  %s15 = inlined_call_operand.vmem [shape: f32[1,128], index: 15, kind: input, shape index: {}]
  %s16 = inlined_call_operand.vmem [shape: f32[1,128], index: 16, kind: input, shape index: {}]
  %s17 = inlined_call_operand.<no memory space> [shape: f32[1,1], index: 17, kind: input, shape index: {}]
  %s18 = inlined_call_operand.hbm [shape: f32[1,8,8], index: 18, kind: output, shape index: {}]
  %s19 = sld [smem:[#allocation0]]
  $region106: #{tpu_custom_call.1} parent=0
    _
  %s21 = ssub.s32 1, %s19
  %s22 = scalar_select 0, %s21, %s19
  %v23 = vstv %s10
  %24 = vst [vmem:[#allocation2] sm:$0x1] %v23
  %v25 = vstv %s17
  %26 = vst [vmem:[#allocation3] sm:$0x1] %v25
  $region1: #{tpu_custom_call.1} parent=0
    #allocation4 [shape = 'u8[4096]{0}', space=vmem, size = 0x1000, scoped, tag = 'input window, operand 3, single buffered']
    #allocation5 [shape = 's32[1]{0}', space=sflag, size = 0x4, scoped, tag = 'scoped memory for tpu_custom_call.1']
    #allocation6 [shape = 's32[1]{0}', space=sflag, size = 0x4, scoped, tag = 'scoped memory for tpu_custom_call.1']
    #allocation7 [shape = 'u8[4096]{0}', space=vmem, size = 0x1000, scoped, tag = 'input window, operand 4, single buffered']
    #allocation8 [shape = 's32[1]{0}', space=sflag, size = 0x4, scoped, tag = 'scoped memory for tpu_custom_call.1']
    #allocation9 [shape = 'u8[4096]{0}', space=vmem, size = 0x1000, scoped, tag = 'input window, operand 5, single buffered']
    #allocation10 [shape = 'u8[512]{0}', space=vmem, size = 0x400, scoped, tag = 'input window, operand 8, single buffered']
    #allocation11 [shape = 's32[1]{0}', space=sflag, size = 0x4, scoped, tag = 'scoped memory for tpu_custom_call.1']
    #allocation12 [shape = 'u8[24576]{0}', space=vmem, size = 0x6000, scoped, tag = 'input window, operand 11, single buffered']
    #allocation13 [shape = 'u8[131072]{0}', space=vmem, size = 0x20000, scoped, tag = 'input window, operand 14, single buffered']
    #allocation14 [shape = 's32[1]{0}', space=sflag, size = 0x4, scoped, tag = 'scoped memory for tpu_custom_call.1']
    #allocation15 [shape = 'u8[4096]{0}', space=vmem, size = 0x1000, scoped, tag = 'output window, operand 0, single buffered']
    %27 = vsyncpa [#allocation5], 0
    %28 = vsyncpa [#allocation8], 0
    %29 = vsyncpa [#allocation11], 0
    %30 = vsyncpa [#allocation14], 0
    %31 = vsyncpa [#allocation6], 0
    // Predicated region
    $region2: #{tpu_custom_call.1} parent=1 // pred_check
      _
    $region3: #{tpu_custom_call.1} parent=1 // pred_check_branch
      %33 = sbr.rel (0) target = $region5
    $region4: #{tpu_custom_call.1} parent=1 // pred_region
      _
    $region5: #{tpu_custom_call.1} parent=1 // pred_fallthru
      _
    // Predicated region
    $region6: #{tpu_custom_call.1} parent=1 // pred_check
      _
    $region7: #{tpu_custom_call.1} parent=1 // pred_check_branch
      %35 = sbr.rel (0) target = $region9
    $region8: #{tpu_custom_call.1} parent=1 // pred_region
      _
    $region9: #{tpu_custom_call.1} parent=1 // pred_fallthru
      _
    // Predicated region
    $region10: #{tpu_custom_call.1} parent=1 // pred_check
      _
    $region11: #{tpu_custom_call.1} parent=1 // pred_check_branch
      %37 = sbr.rel (0) target = $region13
    $region12: #{tpu_custom_call.1} parent=1 // pred_region
      _
    $region13: #{tpu_custom_call.1} parent=1 // pred_fallthru
      _
    // Predicated region
    $region14: #{tpu_custom_call.1} parent=1 // pred_check
      _
    $region15: #{tpu_custom_call.1} parent=1 // pred_check_branch
      %39 = sbr.rel (0) target = $region17
    $region16: #{tpu_custom_call.1} parent=1 // pred_region
      %s41 = ssub.s32 128, 128
      %42 = vsyncadd [#allocation5], %s41
      %s44 = sshll.u32 [#allocation4], 4
      %s45 = int_to_ptr.vmem [resolvable:$true] %s44
      %47 = dma.hbm_to_vmem [thread:$0]  %s3, 128, %s45, [#allocation5]
    $region17: #{tpu_custom_call.1} parent=1 // pred_fallthru
      _
    // Predicated region
    $region18: #{tpu_custom_call.1} parent=1 // pred_check
      _
    $region19: #{tpu_custom_call.1} parent=1 // pred_check_branch
      %49 = sbr.rel (0) target = $region21
    $region20: #{tpu_custom_call.1} parent=1 // pred_region
      %s51 = ssub.s32 128, 128
      %52 = vsyncadd [#allocation8], %s51
      %s54 = sshll.u32 [#allocation7], 4
      %s55 = int_to_ptr.vmem [resolvable:$true] %s54
      %57 = dma.hbm_to_vmem [thread:$0]  %s4, 128, %s55, [#allocation8]
    $region21: #{tpu_custom_call.1} parent=1 // pred_fallthru
      _
    // Predicated region
    $region22: #{tpu_custom_call.1} parent=1 // pred_check
      _
    $region23: #{tpu_custom_call.1} parent=1 // pred_check_branch
      %59 = sbr.rel (0) target = $region25
    $region24: #{tpu_custom_call.1} parent=1 // pred_region
      %s61 = ssub.s32 128, 128
      %62 = vsyncadd [#allocation8], %s61
      %s64 = sshll.u32 [#allocation9], 4
      %s65 = int_to_ptr.vmem [resolvable:$true] %s64
      %67 = dma.hbm_to_vmem [thread:$0]  %s5, 128, %s65, [#allocation8]
    $region25: #{tpu_custom_call.1} parent=1 // pred_fallthru
      _
    // Predicated region
    $region26: #{tpu_custom_call.1} parent=1 // pred_check
      _
    $region27: #{tpu_custom_call.1} parent=1 // pred_check_branch
      %69 = sbr.rel (0) target = $region29
    $region28: #{tpu_custom_call.1} parent=1 // pred_region
      _
    $region29: #{tpu_custom_call.1} parent=1 // pred_fallthru
      _
    // Predicated region
    $region30: #{tpu_custom_call.1} parent=1 // pred_check
      _
    $region31: #{tpu_custom_call.1} parent=1 // pred_check_branch
      %71 = sbr.rel (0) target = $region33
    $region32: #{tpu_custom_call.1} parent=1 // pred_region
      _
    $region33: #{tpu_custom_call.1} parent=1 // pred_fallthru
      _
    // Predicated region
    $region34: #{tpu_custom_call.1} parent=1 // pred_check
      _
    $region35: #{tpu_custom_call.1} parent=1 // pred_check_branch
      %73 = sbr.rel (0) target = $region37
    $region36: #{tpu_custom_call.1} parent=1 // pred_region
      %s75 = ssub.s32 16, 16
      %76 = vsyncadd [#allocation11], %s75
      %s78 = sshll.u32 [#allocation10], 4
      %s79 = int_to_ptr.vmem [resolvable:$true] %s78
      %81 = dma.hbm_to_vmem [thread:$0]  %s8, 16, %s79, [#allocation11]
    $region37: #{tpu_custom_call.1} parent=1 // pred_fallthru
      _
    // Predicated region
    $region38: #{tpu_custom_call.1} parent=1 // pred_check
      _
    $region39: #{tpu_custom_call.1} parent=1 // pred_check_branch
      %83 = sbr.rel (0) target = $region41
    $region40: #{tpu_custom_call.1} parent=1 // pred_region
      _
    $region41: #{tpu_custom_call.1} parent=1 // pred_fallthru
      _
    // Predicated region
    $region42: #{tpu_custom_call.1} parent=1 // pred_check
      _
    $region43: #{tpu_custom_call.1} parent=1 // pred_check_branch
      %85 = sbr.rel (0) target = $region45
    $region44: #{tpu_custom_call.1} parent=1 // pred_region
      _
    $region45: #{tpu_custom_call.1} parent=1 // pred_fallthru
      _
    // Predicated region
    $region46: #{tpu_custom_call.1} parent=1 // pred_check
      _
    $region47: #{tpu_custom_call.1} parent=1 // pred_check_branch
      %87 = sbr.rel (0) target = $region49
    $region48: #{tpu_custom_call.1} parent=1 // pred_region
      %s89 = ssub.s32 768, 768
      %90 = vsyncadd [#allocation11], %s89
      %s91 = sshll.u32 [#allocation12], 4
      %s92 = int_to_ptr.vmem [resolvable:$true] %s91
      %97 = dma.hbm_to_vmem [thread:$0]  %s11, 768, %s92, [#allocation11], 256, 256, 16
    $region49: #{tpu_custom_call.1} parent=1 // pred_fallthru
      _
    // Predicated region
    $region50: #{tpu_custom_call.1} parent=1 // pred_check
      _
    $region51: #{tpu_custom_call.1} parent=1 // pred_check_branch
      %99 = sbr.rel (0) target = $region53
    $region52: #{tpu_custom_call.1} parent=1 // pred_region
      _
    $region53: #{tpu_custom_call.1} parent=1 // pred_fallthru
      _
    // Predicated region
    $region54: #{tpu_custom_call.1} parent=1 // pred_check
      _
    $region55: #{tpu_custom_call.1} parent=1 // pred_check_branch
      %101 = sbr.rel (0) target = $region57
    $region56: #{tpu_custom_call.1} parent=1 // pred_region
      _
    $region57: #{tpu_custom_call.1} parent=1 // pred_fallthru
      _
    // Predicated region
    $region58: #{tpu_custom_call.1} parent=1 // pred_check
      _
    $region59: #{tpu_custom_call.1} parent=1 // pred_check_branch
      %103 = sbr.rel (0) target = $region61
    $region60: #{tpu_custom_call.1} parent=1 // pred_region
      %s105 = ssub.s32 4096, 4096
      %106 = vsyncadd [#allocation14], %s105
      %s107 = sshll.u32 [#allocation13], 4
      %s108 = int_to_ptr.vmem [resolvable:$true] %s107
      %113 = dma.hbm_to_vmem [thread:$0]  %s14, 4096, %s108, [#allocation14], 128, 128, 8
    $region61: #{tpu_custom_call.1} parent=1 // pred_fallthru
      _
    // Predicated region
    $region62: #{tpu_custom_call.1} parent=1 // pred_check
      _
    $region63: #{tpu_custom_call.1} parent=1 // pred_check_branch
      %115 = sbr.rel (0) target = $region65
    $region64: #{tpu_custom_call.1} parent=1 // pred_region
      _
    $region65: #{tpu_custom_call.1} parent=1 // pred_fallthru
      _
    // Predicated region
    $region66: #{tpu_custom_call.1} parent=1 // pred_check
      _
    $region67: #{tpu_custom_call.1} parent=1 // pred_check_branch
      %117 = sbr.rel (0) target = $region69
    $region68: #{tpu_custom_call.1} parent=1 // pred_region
      _
    $region69: #{tpu_custom_call.1} parent=1 // pred_fallthru
      _
    // Predicated region
    $region70: #{tpu_custom_call.1} parent=1 // pred_check
      _
    $region71: #{tpu_custom_call.1} parent=1 // pred_check_branch
      %119 = sbr.rel (0) target = $region73
    $region72: #{tpu_custom_call.1} parent=1 // pred_region
      _
    $region73: #{tpu_custom_call.1} parent=1 // pred_fallthru
      _
    // Predicated region
    $region74: #{tpu_custom_call.1} parent=1 // pred_check
      _
    $region75: #{tpu_custom_call.1} parent=1 // pred_check_branch
      %121 = sbr.rel (0) target = $region77
    $region76: #{tpu_custom_call.1} parent=1 // pred_region
      %122 = dma.done [#allocation5], 128
    $region77: #{tpu_custom_call.1} parent=1 // pred_fallthru
      _
    // Predicated region
    $region78: #{tpu_custom_call.1} parent=1 // pred_check
      _
    $region79: #{tpu_custom_call.1} parent=1 // pred_check_branch
      %124 = sbr.rel (0) target = $region81
    $region80: #{tpu_custom_call.1} parent=1 // pred_region
      %125 = dma.done [#allocation8], 128
    $region81: #{tpu_custom_call.1} parent=1 // pred_fallthru
      _
    // Predicated region
    $region82: #{tpu_custom_call.1} parent=1 // pred_check
      _
    $region83: #{tpu_custom_call.1} parent=1 // pred_check_branch
      %127 = sbr.rel (0) target = $region85
    $region84: #{tpu_custom_call.1} parent=1 // pred_region
      %128 = dma.done [#allocation8], 128
    $region85: #{tpu_custom_call.1} parent=1 // pred_fallthru
      _
    // Predicated region
    $region86: #{tpu_custom_call.1} parent=1 // pred_check
      _
    $region87: #{tpu_custom_call.1} parent=1 // pred_check_branch
      %130 = sbr.rel (0) target = $region89
    $region88: #{tpu_custom_call.1} parent=1 // pred_region
      %131 = dma.done [#allocation11], 16
    $region89: #{tpu_custom_call.1} parent=1 // pred_fallthru
      _
    // Predicated region
    $region90: #{tpu_custom_call.1} parent=1 // pred_check
      _
    $region91: #{tpu_custom_call.1} parent=1 // pred_check_branch
      %133 = sbr.rel (0) target = $region93
    $region92: #{tpu_custom_call.1} parent=1 // pred_region
      %134 = dma.done [#allocation11], 768
    $region93: #{tpu_custom_call.1} parent=1 // pred_fallthru
      _
    // Predicated region
    $region94: #{tpu_custom_call.1} parent=1 // pred_check
      _
    $region95: #{tpu_custom_call.1} parent=1 // pred_check_branch
      %136 = sbr.rel (0) target = $region97
    $region96: #{tpu_custom_call.1} parent=1 // pred_region
      %137 = dma.done [#allocation14], 4096
    $region97: #{tpu_custom_call.1} parent=1 // pred_fallthru
      _
    %v138 = vld [vmem:[%s2] sm:$0xff]
    %v139 = vld [vmem:[%s1] sm:$0xff]
    %v140 = vld [vmem:[%s1 + $0x8] sm:$0xff]
    %v141 = vld [vmem:[%s1 + $0x10] sm:$0xff]
    %v142 = vld [vmem:[%s1 + $0x18] sm:$0xff]
    %v143 = vld [vmem:[%s1 + $0x20] sm:$0xff]
    %v144 = vld [vmem:[%s1 + $0x28] sm:$0xff]
    %v145 = vld [vmem:[%s1 + $0x30] sm:$0xff]
    %v146 = vld [vmem:[%s1 + $0x38] sm:$0xff]
    %v148 = vcombine.high %v138, %v138
    %v150 = vunpack.c.l.s4 1966171168
    %v151 = vunpack.c.0.s8 %v150
    %v152 = vlaneseq
    %v153 = vshrl.u32 %v152, 7
    %v154 = vsub.s32 %v151, %v153
    %v155 = vrot.slane %v138, %v154
    %v157 = vunpack.c.l.s4 1966171168
    %v158 = vunpack.c.0.s8 %v157
    %v159 = vlaneseq
    %v160 = vshrl.u32 %v159, 7
    %v161 = vsub.s32 %v158, %v160
    %v162 = vrot.slane %v148, %v161
    %v163 = vcombine.high %v155, %v155
    %v164 = vcombine.high %v162, %v162
    %v166 = vunpack.c.l.s4 1966171168
    %v167 = vunpack.c.0.s8 %v166
    %v168 = vlaneseq
    %v169 = vshrl.u32 %v168, 7
    %v170 = vsub.s32 %v167, %v169
    %v171 = vrot.slane %v155, %v170
    %v173 = vunpack.c.l.s4 1966171168
    %v174 = vunpack.c.0.s8 %v173
    %v175 = vlaneseq
    %v176 = vshrl.u32 %v175, 7
    %v177 = vsub.s32 %v174, %v176
    %v178 = vrot.slane %v162, %v177
    %v180 = vunpack.c.l.s4 1966171168
    %v181 = vunpack.c.0.s8 %v180
    %v182 = vlaneseq
    %v183 = vshrl.u32 %v182, 7
    %v184 = vsub.s32 %v181, %v183
    %v185 = vrot.slane %v163, %v184
    %v187 = vunpack.c.l.s4 1966171168
    %v188 = vunpack.c.0.s8 %v187
    %v189 = vlaneseq
    %v190 = vshrl.u32 %v189, 7
    %v191 = vsub.s32 %v188, %v190
    %v192 = vrot.slane %v164, %v191
    %v193 = vcombine.high %v171, %v171
    %v194 = vcombine.high %v178, %v178
    %v195 = vcombine.high %v185, %v185
    %v196 = vcombine.high %v192, %v192
    %v197 = vlaneseq
    %v198 = vshrl.u32 %v197, 7
    %v199 = vsub.s32 0, %v198
    %v200 = vrot.slane %v171, %v199
    %v201 = vlaneseq
    %v202 = vshrl.u32 %v201, 7
    %v203 = vsub.s32 0, %v202
    %v204 = vrot.slane %v185, %v203
    %v205 = vlaneseq
    %v206 = vshrl.u32 %v205, 7
    %v207 = vsub.s32 0, %v206
    %v208 = vrot.slane %v193, %v207
    %v209 = vlaneseq
    %v210 = vshrl.u32 %v209, 7
    %v211 = vsub.s32 0, %v210
    %v212 = vrot.slane %v195, %v211
    %v213 = vlaneseq
    %v214 = vshrl.u32 %v213, 7
    %v215 = vsub.s32 0, %v214
    %v216 = vrot.slane %v178, %v215
    %v217 = vlaneseq
    %v218 = vshrl.u32 %v217, 7
    %v219 = vsub.s32 0, %v218
    %v220 = vrot.slane %v192, %v219
    %v221 = vlaneseq
    %v222 = vshrl.u32 %v221, 7
    %v223 = vsub.s32 0, %v222
    %v224 = vrot.slane %v194, %v223
    %v225 = vlaneseq
    %v226 = vshrl.u32 %v225, 7
    %v227 = vsub.s32 0, %v226
    %v228 = vrot.slane %v196, %v227
    %v237 = vmul.f32 %v139, %v200
    %v238 = vmul.f32 %v140, %v204
    %v239 = vmul.f32 %v141, %v208
    %v240 = vmul.f32 %v142, %v212
    %v241 = vmul.f32 %v143, %v216
    %v242 = vmul.f32 %v144, %v220
    %v243 = vmul.f32 %v145, %v224
    %v244 = vmul.f32 %v146, %v228
    %v245 = vld [vmem:[#allocation4] sm:$0xff]
    %vm246 = vcmask 64512
    %v247 = vsel %vm246, %v138, 0
    %249 = vmatprep.subr.mxu0 0.0
    %250 = vmatpush1.msra.mxu0 0.0
    %251 = vmatprep.subr.mxu0 0.0
    %252 = vmatpush1.msra.mxu0 0.0
    %253 = vmatprep.subr.mxu0 0.0
    %254 = vmatpush1.msra.mxu0 0.0
    %255 = vmatprep.subr.mxu0 0.0
    %256 = vmatpush1.msra.mxu0 0.0
    %257 = vmatprep.subr.mxu0 0.0
    %258 = vmatpush1.msra.mxu0 0.0
    %259 = vmatprep.subr.mxu0 0.0
    %260 = vmatpush1.msra.mxu0 0.0
    %261 = vmatprep.subr.mxu0 0.0
    %262 = vmatpush1.msra.mxu0 0.0
    %263 = vmatprep.subr.mxu0 0.0
    %264 = vmatpush1.msra.mxu0 0.0
    %265 = vmatprep.subr.mxu0 0.0
    %266 = vmatpush1.msra.mxu0 0.0
    %267 = vmatprep.subr.mxu0 0.0
    %268 = vmatpush1.msra.mxu0 0.0
    %269 = vmatprep.subr.mxu0 0.0
    %270 = vmatpush1.msra.mxu0 0.0
    %271 = vmatprep.subr.mxu0 0.0
    %272 = vmatpush1.msra.mxu0 0.0
    %273 = vmatprep.subr.mxu0 0.0
    %274 = vmatpush1.msra.mxu0 0.0
    %275 = vmatprep.subr.mxu0 0.0
    %276 = vmatpush1.msra.mxu0 0.0
    %277 = vmatprep.subr.mxu0 0.0
    %278 = vmatpush1.msra.mxu0 0.0
    %279 = vmatprep.subr.mxu0 0.0
    %280 = vmatpush1.msra.mxu0 %v245
    %281 = vmatprep.subr.mxu0 0.0
    %282 = vmatpush2.msra.mxu0 0.0
    %283 = vmatprep.subr.mxu0 0.0
    %284 = vmatpush2.msra.mxu0 0.0
    %285 = vmatprep.subr.mxu0 0.0
    %286 = vmatpush2.msra.mxu0 0.0
    %287 = vmatprep.subr.mxu0 0.0
    %288 = vmatpush2.msra.mxu0 0.0
    %289 = vmatprep.subr.mxu0 0.0
    %290 = vmatpush2.msra.mxu0 0.0
    %291 = vmatprep.subr.mxu0 0.0
    %292 = vmatpush2.msra.mxu0 0.0
    %293 = vmatprep.subr.mxu0 0.0
    %294 = vmatpush2.msra.mxu0 0.0
    %295 = vmatprep.subr.mxu0 0.0
    %296 = vmatpush2.msra.mxu0 0.0
    %297 = vmatprep.subr.mxu0 0.0
    %298 = vmatpush2.msra.mxu0 0.0
    %299 = vmatprep.subr.mxu0 0.0
    %300 = vmatpush2.msra.mxu0 0.0
    %301 = vmatprep.subr.mxu0 0.0
    %302 = vmatpush2.msra.mxu0 0.0
    %303 = vmatprep.subr.mxu0 0.0
    %304 = vmatpush2.msra.mxu0 0.0
    %305 = vmatprep.subr.mxu0 0.0
    %306 = vmatpush2.msra.mxu0 0.0
    %307 = vmatprep.subr.mxu0 0.0
    %308 = vmatpush2.msra.mxu0 0.0
    %309 = vmatprep.subr.mxu0 0.0
    %310 = vmatpush2.msra.mxu0 0.0
    %311 = vmatprep.subr.mxu0 0.0
    %312 = vmatpush2.msra.mxu0 0.0
    %313 = vmatprep.mubr.f32.mxu0 0.0
    %314 = vmatmul.mubr.f32.gmra.mxu0 %v247
    %v315 = vpop.f32.mrf.mxu0
    %v316 = vadd.f32 0.0, %v315
    %v317 = vpop.f32.mrf.mxu0
    %318 = vdwg.mxu0
    %v319 = vld [vmem:[#allocation7] sm:$0xff]
    %v320 = vld [vmem:[#allocation9] sm:$0xff]
    %v322 = vsel %vm246, %v237, 0
    %v325 = vsel %vm246, %v238, 0
    %v328 = vsel %vm246, %v239, 0
    %v331 = vsel %vm246, %v240, 0
    %v334 = vsel %vm246, %v241, 0
    %v337 = vsel %vm246, %v242, 0
    %v340 = vsel %vm246, %v243, 0
    %v343 = vsel %vm246, %v244, 0
    %345 = vmatprep.subr.mxu0 0.0
    %346 = vmatpush1.msra.mxu0 0.0
    %347 = vmatprep.subr.mxu0 0.0
    %348 = vmatpush1.msra.mxu0 0.0
    %349 = vmatprep.subr.mxu0 0.0
    %350 = vmatpush1.msra.mxu0 0.0
    %351 = vmatprep.subr.mxu0 0.0
    %352 = vmatpush1.msra.mxu0 0.0
    %353 = vmatprep.subr.mxu0 0.0
    %354 = vmatpush1.msra.mxu0 0.0
    %355 = vmatprep.subr.mxu0 0.0
    %356 = vmatpush1.msra.mxu0 0.0
    %357 = vmatprep.subr.mxu0 0.0
    %358 = vmatpush1.msra.mxu0 0.0
    %359 = vmatprep.subr.mxu0 0.0
    %360 = vmatpush1.msra.mxu0 0.0
    %361 = vmatprep.subr.mxu0 0.0
    %362 = vmatpush1.msra.mxu0 0.0
    %363 = vmatprep.subr.mxu0 0.0
    %364 = vmatpush1.msra.mxu0 0.0
    %365 = vmatprep.subr.mxu0 0.0
    %366 = vmatpush1.msra.mxu0 0.0
    %367 = vmatprep.subr.mxu0 0.0
    %368 = vmatpush1.msra.mxu0 0.0
    %369 = vmatprep.subr.mxu0 0.0
    %370 = vmatpush1.msra.mxu0 0.0
    %371 = vmatprep.subr.mxu0 0.0
    %372 = vmatpush1.msra.mxu0 0.0
    %373 = vmatprep.subr.mxu0 0.0
    %374 = vmatpush1.msra.mxu0 0.0
    %375 = vmatprep.subr.mxu0 0.0
    %376 = vmatpush1.msra.mxu0 %v320
    %377 = vmatprep.subr.mxu0 0.0
    %378 = vmatpush2.msra.mxu0 0.0
    %379 = vmatprep.subr.mxu0 0.0
    %380 = vmatpush2.msra.mxu0 0.0
    %381 = vmatprep.subr.mxu0 0.0
    %382 = vmatpush2.msra.mxu0 0.0
    %383 = vmatprep.subr.mxu0 0.0
    %384 = vmatpush2.msra.mxu0 0.0
    %385 = vmatprep.subr.mxu0 0.0
    %386 = vmatpush2.msra.mxu0 0.0
    %387 = vmatprep.subr.mxu0 0.0
    %388 = vmatpush2.msra.mxu0 0.0
    %389 = vmatprep.subr.mxu0 0.0
    %390 = vmatpush2.msra.mxu0 0.0
    %391 = vmatprep.subr.mxu0 0.0
    %392 = vmatpush2.msra.mxu0 0.0
    %393 = vmatprep.subr.mxu0 0.0
    %394 = vmatpush2.msra.mxu0 0.0
    %395 = vmatprep.subr.mxu0 0.0
    %396 = vmatpush2.msra.mxu0 0.0
    %397 = vmatprep.subr.mxu0 0.0
    %398 = vmatpush2.msra.mxu0 0.0
    %399 = vmatprep.subr.mxu0 0.0
    %400 = vmatpush2.msra.mxu0 0.0
    %401 = vmatprep.subr.mxu0 0.0
    %402 = vmatpush2.msra.mxu0 0.0
    %403 = vmatprep.subr.mxu0 0.0
    %404 = vmatpush2.msra.mxu0 0.0
    %405 = vmatprep.subr.mxu0 0.0
    %406 = vmatpush2.msra.mxu0 0.0
    %407 = vmatprep.subr.mxu0 0.0
    %408 = vmatpush2.msra.mxu0 0.0
    %409 = vmatprep.mubr.f32.mxu0 0.0
    %410 = vmatmul.mubr.f32.gmra.mxu0 %v322
    %v411 = vpop.f32.mrf.mxu0
    %v412 = vadd.f32 0.0, %v411
    %v413 = vpop.f32.mrf.mxu0
    %414 = vmatprep.mubr.f32.mxu0 0.0
    %415 = vmatmul.mubr.f32.gmra.mxu0 %v325
    %v416 = vpop.f32.mrf.mxu0
    %v417 = vadd.f32 0.0, %v416
    %v418 = vpop.f32.mrf.mxu0
    %419 = vmatprep.mubr.f32.mxu0 0.0
    %420 = vmatmul.mubr.f32.gmra.mxu0 %v328
    %v421 = vpop.f32.mrf.mxu0
    %v422 = vadd.f32 0.0, %v421
    %v423 = vpop.f32.mrf.mxu0
    %424 = vmatprep.mubr.f32.mxu0 0.0
    %425 = vmatmul.mubr.f32.gmra.mxu0 %v331
    %v426 = vpop.f32.mrf.mxu0
    %v427 = vadd.f32 0.0, %v426
    %v428 = vpop.f32.mrf.mxu0
    %429 = vmatprep.mubr.f32.mxu0 0.0
    %430 = vmatmul.mubr.f32.gmra.mxu0 %v334
    %v431 = vpop.f32.mrf.mxu0
    %v432 = vadd.f32 0.0, %v431
    %v433 = vpop.f32.mrf.mxu0
    %434 = vmatprep.mubr.f32.mxu0 0.0
    %435 = vmatmul.mubr.f32.gmra.mxu0 %v337
    %v436 = vpop.f32.mrf.mxu0
    %v437 = vadd.f32 0.0, %v436
    %v438 = vpop.f32.mrf.mxu0
    %439 = vmatprep.mubr.f32.mxu0 0.0
    %440 = vmatmul.mubr.f32.gmra.mxu0 %v340
    %v441 = vpop.f32.mrf.mxu0
    %v442 = vadd.f32 0.0, %v441
    %v443 = vpop.f32.mrf.mxu0
    %444 = vmatprep.mubr.f32.mxu0 0.0
    %445 = vmatmul.mubr.f32.gmra.mxu0 %v343
    %v446 = vpop.f32.mrf.mxu0
    %v447 = vadd.f32 0.0, %v446
    %v448 = vpop.f32.mrf.mxu0
    %449 = vdwg.mxu0
    %v451 = vsel %vm246, %v139, 0
    %v454 = vsel %vm246, %v140, 0
    %v457 = vsel %vm246, %v141, 0
    %v460 = vsel %vm246, %v142, 0
    %v463 = vsel %vm246, %v143, 0
    %v466 = vsel %vm246, %v144, 0
    %v469 = vsel %vm246, %v145, 0
    %v472 = vsel %vm246, %v146, 0
    %474 = vmatprep.subr.mxu0 0.0
    %475 = vmatpush1.msra.mxu0 0.0
    %476 = vmatprep.subr.mxu0 0.0
    %477 = vmatpush1.msra.mxu0 0.0
    %478 = vmatprep.subr.mxu0 0.0
    %479 = vmatpush1.msra.mxu0 0.0
    %480 = vmatprep.subr.mxu0 0.0
    %481 = vmatpush1.msra.mxu0 0.0
    %482 = vmatprep.subr.mxu0 0.0
    %483 = vmatpush1.msra.mxu0 0.0
    %484 = vmatprep.subr.mxu0 0.0
    %485 = vmatpush1.msra.mxu0 0.0
    %486 = vmatprep.subr.mxu0 0.0
    %487 = vmatpush1.msra.mxu0 0.0
    %488 = vmatprep.subr.mxu0 0.0
    %489 = vmatpush1.msra.mxu0 0.0
    %490 = vmatprep.subr.mxu0 0.0
    %491 = vmatpush1.msra.mxu0 0.0
    %492 = vmatprep.subr.mxu0 0.0
    %493 = vmatpush1.msra.mxu0 0.0
    %494 = vmatprep.subr.mxu0 0.0
    %495 = vmatpush1.msra.mxu0 0.0
    %496 = vmatprep.subr.mxu0 0.0
    %497 = vmatpush1.msra.mxu0 0.0
    %498 = vmatprep.subr.mxu0 0.0
    %499 = vmatpush1.msra.mxu0 0.0
    %500 = vmatprep.subr.mxu0 0.0
    %501 = vmatpush1.msra.mxu0 0.0
    %502 = vmatprep.subr.mxu0 0.0
    %503 = vmatpush1.msra.mxu0 0.0
    %504 = vmatprep.subr.mxu0 0.0
    %505 = vmatpush1.msra.mxu0 %v319
    %506 = vmatprep.subr.mxu0 0.0
    %507 = vmatpush2.msra.mxu0 0.0
    %508 = vmatprep.subr.mxu0 0.0
    %509 = vmatpush2.msra.mxu0 0.0
    %510 = vmatprep.subr.mxu0 0.0
    %511 = vmatpush2.msra.mxu0 0.0
    %512 = vmatprep.subr.mxu0 0.0
    %513 = vmatpush2.msra.mxu0 0.0
    %514 = vmatprep.subr.mxu0 0.0
    %515 = vmatpush2.msra.mxu0 0.0
    %516 = vmatprep.subr.mxu0 0.0
    %517 = vmatpush2.msra.mxu0 0.0
    %518 = vmatprep.subr.mxu0 0.0
    %519 = vmatpush2.msra.mxu0 0.0
    %520 = vmatprep.subr.mxu0 0.0
    %521 = vmatpush2.msra.mxu0 0.0
    %522 = vmatprep.subr.mxu0 0.0
    %523 = vmatpush2.msra.mxu0 0.0
    %524 = vmatprep.subr.mxu0 0.0
    %525 = vmatpush2.msra.mxu0 0.0
    %526 = vmatprep.subr.mxu0 0.0
    %527 = vmatpush2.msra.mxu0 0.0
    %528 = vmatprep.subr.mxu0 0.0
    %529 = vmatpush2.msra.mxu0 0.0
    %530 = vmatprep.subr.mxu0 0.0
    %531 = vmatpush2.msra.mxu0 0.0
    %532 = vmatprep.subr.mxu0 0.0
    %533 = vmatpush2.msra.mxu0 0.0
    %534 = vmatprep.subr.mxu0 0.0
    %535 = vmatpush2.msra.mxu0 0.0
    %536 = vmatprep.subr.mxu0 0.0
    %537 = vmatpush2.msra.mxu0 0.0
    %538 = vmatprep.mubr.f32.mxu0 0.0
    %539 = vmatmul.mubr.f32.gmra.mxu0 %v451
    %v540 = vpop.f32.mrf.mxu0
    %v541 = vadd.f32 %v412, %v540
    %v542 = vpop.f32.mrf.mxu0
    %543 = vmatprep.mubr.f32.mxu0 0.0
    %544 = vmatmul.mubr.f32.gmra.mxu0 %v454
    %v545 = vpop.f32.mrf.mxu0
    %v546 = vadd.f32 %v417, %v545
    %v547 = vpop.f32.mrf.mxu0
    %548 = vmatprep.mubr.f32.mxu0 0.0
    %549 = vmatmul.mubr.f32.gmra.mxu0 %v457
    %v550 = vpop.f32.mrf.mxu0
    %v551 = vadd.f32 %v422, %v550
    %v552 = vpop.f32.mrf.mxu0
    %553 = vmatprep.mubr.f32.mxu0 0.0
    %554 = vmatmul.mubr.f32.gmra.mxu0 %v460
    %v555 = vpop.f32.mrf.mxu0
    %v556 = vadd.f32 %v427, %v555
    %v557 = vpop.f32.mrf.mxu0
    %558 = vmatprep.mubr.f32.mxu0 0.0
    %559 = vmatmul.mubr.f32.gmra.mxu0 %v463
    %v560 = vpop.f32.mrf.mxu0
    %v561 = vadd.f32 %v432, %v560
    %v562 = vpop.f32.mrf.mxu0
    %563 = vmatprep.mubr.f32.mxu0 0.0
    %564 = vmatmul.mubr.f32.gmra.mxu0 %v466
    %v565 = vpop.f32.mrf.mxu0
    %v566 = vadd.f32 %v437, %v565
    %v567 = vpop.f32.mrf.mxu0
    %568 = vmatprep.mubr.f32.mxu0 0.0
    %569 = vmatmul.mubr.f32.gmra.mxu0 %v469
    %v570 = vpop.f32.mrf.mxu0
    %v571 = vadd.f32 %v442, %v570
    %v572 = vpop.f32.mrf.mxu0
    %573 = vmatprep.mubr.f32.mxu0 0.0
    %574 = vmatmul.mubr.f32.gmra.mxu0 %v472
    %v575 = vpop.f32.mrf.mxu0
    %v576 = vadd.f32 %v447, %v575
    %v577 = vpop.f32.mrf.mxu0
    %578 = vdwg.mxu0
    %v580 = vcombine.high %v316, %v316
    %v582 = vunpack.c.l.s4 1966171168
    %v583 = vunpack.c.0.s8 %v582
    %v584 = vlaneseq
    %v585 = vshrl.u32 %v584, 7
    %v586 = vsub.s32 %v583, %v585
    %v587 = vrot.slane %v316, %v586
    %v589 = vunpack.c.l.s4 1966171168
    %v590 = vunpack.c.0.s8 %v589
    %v591 = vlaneseq
    %v592 = vshrl.u32 %v591, 7
    %v593 = vsub.s32 %v590, %v592
    %v594 = vrot.slane %v580, %v593
    %v595 = vcombine.high %v587, %v587
    %v596 = vcombine.high %v594, %v594
    %v598 = vunpack.c.l.s4 1966171168
    %v599 = vunpack.c.0.s8 %v598
    %v600 = vlaneseq
    %v601 = vshrl.u32 %v600, 7
    %v602 = vsub.s32 %v599, %v601
    %v603 = vrot.slane %v587, %v602
    %v605 = vunpack.c.l.s4 1966171168
    %v606 = vunpack.c.0.s8 %v605
    %v607 = vlaneseq
    %v608 = vshrl.u32 %v607, 7
    %v609 = vsub.s32 %v606, %v608
    %v610 = vrot.slane %v594, %v609
    %v612 = vunpack.c.l.s4 1966171168
    %v613 = vunpack.c.0.s8 %v612
    %v614 = vlaneseq
    %v615 = vshrl.u32 %v614, 7
    %v616 = vsub.s32 %v613, %v615
    %v617 = vrot.slane %v595, %v616
    %v619 = vunpack.c.l.s4 1966171168
    %v620 = vunpack.c.0.s8 %v619
    %v621 = vlaneseq
    %v622 = vshrl.u32 %v621, 7
    %v623 = vsub.s32 %v620, %v622
    %v624 = vrot.slane %v596, %v623
    %v625 = vcombine.high %v603, %v603
    %v626 = vcombine.high %v610, %v610
    %v627 = vcombine.high %v617, %v617
    %v628 = vcombine.high %v624, %v624
    %v629 = vlaneseq
    %v630 = vshrl.u32 %v629, 7
    %v631 = vsub.s32 0, %v630
    %v632 = vrot.slane %v603, %v631
    %v633 = vlaneseq
    %v634 = vshrl.u32 %v633, 7
    %v635 = vsub.s32 0, %v634
    %v636 = vrot.slane %v617, %v635
    %v637 = vlaneseq
    %v638 = vshrl.u32 %v637, 7
    %v639 = vsub.s32 0, %v638
    %v640 = vrot.slane %v625, %v639
    %v641 = vlaneseq
    %v642 = vshrl.u32 %v641, 7
    %v643 = vsub.s32 0, %v642
    %v644 = vrot.slane %v627, %v643
    %v645 = vlaneseq
    %v646 = vshrl.u32 %v645, 7
    %v647 = vsub.s32 0, %v646
    %v648 = vrot.slane %v610, %v647
    %v649 = vlaneseq
    %v650 = vshrl.u32 %v649, 7
    %v651 = vsub.s32 0, %v650
    %v652 = vrot.slane %v624, %v651
    %v653 = vlaneseq
    %v654 = vshrl.u32 %v653, 7
    %v655 = vsub.s32 0, %v654
    %v656 = vrot.slane %v626, %v655
    %v657 = vlaneseq
    %v658 = vshrl.u32 %v657, 7
    %v659 = vsub.s32 0, %v658
    %v660 = vrot.slane %v628, %v659
    %v669 = vadd.f32 %v541, %v632
    %v670 = vadd.f32 %v546, %v636
    %v671 = vadd.f32 %v551, %v640
    %v672 = vadd.f32 %v556, %v644
    %v673 = vadd.f32 %v561, %v648
    %v674 = vadd.f32 %v566, %v652
    %v675 = vadd.f32 %v571, %v656
    %v676 = vadd.f32 %v576, %v660
    %v677 = vld [vmem:[%s6] sm:$0x1]
    %v679 = vlaneseq
    %v680 = vshrl.u32 %v679, 7
    %v681 = vsub.s32 0, %v680
    %v682 = vrot.slane %v677, %v681
    %v684 = vadd.f32 %v669, %v682
    %v685 = vadd.f32 %v670, %v682
    %v686 = vadd.f32 %v671, %v682
    %v687 = vadd.f32 %v672, %v682
    %v688 = vadd.f32 %v673, %v682
    %v689 = vadd.f32 %v674, %v682
    %v690 = vadd.f32 %v675, %v682
    %v691 = vadd.f32 %v676, %v682
    %v692 = vxor.u32 %v684, 2147483648
    %v693 = vxor.u32 %v685, 2147483648
    %v694 = vxor.u32 %v686, 2147483648
    %v695 = vxor.u32 %v687, 2147483648
    %v696 = vxor.u32 %v688, 2147483648
    %v697 = vxor.u32 %v689, 2147483648
    %v698 = vxor.u32 %v690, 2147483648
    %v699 = vxor.u32 %v691, 2147483648
    %v700 = vmul.f32 %v692, 1.442695
    %v701 = vpow.pop %v700
    %v702 = vmul.f32 %v693, 1.442695
    %v703 = vpow.pop %v702
    %v704 = vmul.f32 %v694, 1.442695
    %v705 = vpow.pop %v704
    %v706 = vmul.f32 %v695, 1.442695
    %v707 = vpow.pop %v706
    %v708 = vmul.f32 %v696, 1.442695
    %v709 = vpow.pop %v708
    %v710 = vmul.f32 %v697, 1.442695
    %v711 = vpow.pop %v710
    %v712 = vmul.f32 %v698, 1.442695
    %v713 = vpow.pop %v712
    %v714 = vmul.f32 %v699, 1.442695
    %v715 = vpow.pop %v714
    %v716 = vadd.f32 %v701, 1.0
    %v717 = vadd.f32 %v703, 1.0
    %v718 = vadd.f32 %v705, 1.0
    %v719 = vadd.f32 %v707, 1.0
    %v720 = vadd.f32 %v709, 1.0
    %v721 = vadd.f32 %v711, 1.0
    %v722 = vadd.f32 %v713, 1.0
    %v723 = vadd.f32 %v715, 1.0
    %v724 = vrcp.pop %v716
    %v725 = vmul.f32 1.0, %v724
    %v726 = vrcp.pop %v717
    %v727 = vmul.f32 1.0, %v726
    %v728 = vrcp.pop %v718
    %v729 = vmul.f32 1.0, %v728
    %v730 = vrcp.pop %v719
    %v731 = vmul.f32 1.0, %v730
    %v732 = vrcp.pop %v720
    %v733 = vmul.f32 1.0, %v732
    %v734 = vrcp.pop %v721
    %v735 = vmul.f32 1.0, %v734
    %v736 = vrcp.pop %v722
    %v737 = vmul.f32 1.0, %v736
    %v738 = vrcp.pop %v723
    %v739 = vmul.f32 1.0, %v738
    %v740 = vmul.f32 %v684, %v725
    %v741 = vmul.f32 %v685, %v727
    %v742 = vmul.f32 %v686, %v729
    %v743 = vmul.f32 %v687, %v731
    %v744 = vmul.f32 %v688, %v733
    %v745 = vmul.f32 %v689, %v735
    %v746 = vmul.f32 %v690, %v737
    %v747 = vmul.f32 %v691, %v739
    %v748 = vld [vmem:[%s7] sm:$0xff]
    %v749 = vld [vmem:[%s7 + $0x8] sm:$0xff]
    %v750 = vld [vmem:[%s7 + $0x10] sm:$0xff]
    %v751 = vld [vmem:[%s7 + $0x18] sm:$0xff]
    %v752 = vld [vmem:[%s7 + $0x20] sm:$0xff]
    %v753 = vld [vmem:[%s7 + $0x28] sm:$0xff]
    %v754 = vld [vmem:[%s7 + $0x30] sm:$0xff]
    %v755 = vld [vmem:[%s7 + $0x38] sm:$0xff]
    %v756 = vld [vmem:[#allocation10] sm:$0x1]
    %v758 = vlaneseq
    %v759 = vshrl.u32 %v758, 7
    %v760 = vsub.s32 0, %v759
    %v761 = vrot.slane %v756, %v760
    %vm763 = vcmask 523264
    %v765 = vsel %vm763, %v740, 0
    %v768 = vsel %vm763, %v741, 0
    %v771 = vsel %vm763, %v742, 0
    %v774 = vsel %vm763, %v743, 0
    %v777 = vsel %vm763, %v744, 0
    %v780 = vsel %vm763, %v745, 0
    %v783 = vsel %vm763, %v746, 0
    %v786 = vsel %vm763, %v747, 0
    %788 = vmatprep.subr.mxu0 0.0
    %789 = vmatpush1.msra.mxu0 0.0
    %790 = vmatprep.subr.mxu0 0.0
    %791 = vmatpush1.msra.mxu0 0.0
    %792 = vmatprep.subr.mxu0 0.0
    %793 = vmatpush1.msra.mxu0 0.0
    %794 = vmatprep.subr.mxu0 0.0
    %795 = vmatpush1.msra.mxu0 0.0
    %796 = vmatprep.subr.mxu0 0.0
    %797 = vmatpush1.msra.mxu0 0.0
    %798 = vmatprep.subr.mxu0 0.0
    %799 = vmatpush1.msra.mxu0 0.0
    %800 = vmatprep.subr.mxu0 0.0
    %801 = vmatpush1.msra.mxu0 0.0
    %802 = vmatprep.subr.mxu0 0.0
    %803 = vmatpush1.msra.mxu0 0.0
    %804 = vmatprep.subr.mxu0 0.0
    %805 = vmatpush1.msra.mxu0 %v755
    %806 = vmatprep.subr.mxu0 0.0
    %807 = vmatpush1.msra.mxu0 %v754
    %808 = vmatprep.subr.mxu0 0.0
    %809 = vmatpush1.msra.mxu0 %v753
    %810 = vmatprep.subr.mxu0 0.0
    %811 = vmatpush1.msra.mxu0 %v752
    %812 = vmatprep.subr.mxu0 0.0
    %813 = vmatpush1.msra.mxu0 %v751
    %814 = vmatprep.subr.mxu0 0.0
    %815 = vmatpush1.msra.mxu0 %v750
    %816 = vmatprep.subr.mxu0 0.0
    %817 = vmatpush1.msra.mxu0 %v749
    %818 = vmatprep.subr.mxu0 0.0
    %819 = vmatpush1.msra.mxu0 %v748
    %820 = vmatprep.subr.mxu0 0.0
    %821 = vmatpush2.msra.mxu0 0.0
    %822 = vmatprep.subr.mxu0 0.0
    %823 = vmatpush2.msra.mxu0 0.0
    %824 = vmatprep.subr.mxu0 0.0
    %825 = vmatpush2.msra.mxu0 0.0
    %826 = vmatprep.subr.mxu0 0.0
    %827 = vmatpush2.msra.mxu0 0.0
    %828 = vmatprep.subr.mxu0 0.0
    %829 = vmatpush2.msra.mxu0 0.0
    %830 = vmatprep.subr.mxu0 0.0
    %831 = vmatpush2.msra.mxu0 0.0
    %832 = vmatprep.subr.mxu0 0.0
    %833 = vmatpush2.msra.mxu0 0.0
    %834 = vmatprep.subr.mxu0 0.0
    %835 = vmatpush2.msra.mxu0 0.0
    %836 = vmatprep.subr.mxu0 0.0
    %837 = vmatpush2.msra.mxu0 0.0
    %838 = vmatprep.subr.mxu0 0.0
    %839 = vmatpush2.msra.mxu0 0.0
    %840 = vmatprep.subr.mxu0 0.0
    %841 = vmatpush2.msra.mxu0 0.0
    %842 = vmatprep.subr.mxu0 0.0
    %843 = vmatpush2.msra.mxu0 0.0
    %844 = vmatprep.subr.mxu0 0.0
    %845 = vmatpush2.msra.mxu0 0.0
    %846 = vmatprep.subr.mxu0 0.0
    %847 = vmatpush2.msra.mxu0 0.0
    %848 = vmatprep.subr.mxu0 0.0
    %849 = vmatpush2.msra.mxu0 0.0
    %850 = vmatprep.subr.mxu0 0.0
    %851 = vmatpush2.msra.mxu0 0.0
    %852 = vmatprep.mubr.f32.mxu0 0.0
    %853 = vmatmul.mubr.f32.gmra.mxu0 %v765
    %v854 = vpop.f32.mrf.mxu0
    %v855 = vadd.f32 %v761, %v854
    %v856 = vpop.f32.mrf.mxu0
    %857 = vmatprep.mubr.f32.mxu0 0.0
    %858 = vmatmul.mubr.f32.gmra.mxu0 %v768
    %v859 = vpop.f32.mrf.mxu0
    %v860 = vadd.f32 %v761, %v859
    %v861 = vpop.f32.mrf.mxu0
    %862 = vmatprep.mubr.f32.mxu0 0.0
    %863 = vmatmul.mubr.f32.gmra.mxu0 %v771
    %v864 = vpop.f32.mrf.mxu0
    %v865 = vadd.f32 %v761, %v864
    %v866 = vpop.f32.mrf.mxu0
    %867 = vmatprep.mubr.f32.mxu0 0.0
    %868 = vmatmul.mubr.f32.gmra.mxu0 %v774
    %v869 = vpop.f32.mrf.mxu0
    %v870 = vadd.f32 %v761, %v869
    %v871 = vpop.f32.mrf.mxu0
    %872 = vmatprep.mubr.f32.mxu0 0.0
    %873 = vmatmul.mubr.f32.gmra.mxu0 %v777
    %v874 = vpop.f32.mrf.mxu0
    %v875 = vadd.f32 %v761, %v874
    %v876 = vpop.f32.mrf.mxu0
    %877 = vmatprep.mubr.f32.mxu0 0.0
    %878 = vmatmul.mubr.f32.gmra.mxu0 %v780
    %v879 = vpop.f32.mrf.mxu0
    %v880 = vadd.f32 %v761, %v879
    %v881 = vpop.f32.mrf.mxu0
    %882 = vmatprep.mubr.f32.mxu0 0.0
    %883 = vmatmul.mubr.f32.gmra.mxu0 %v783
    %v884 = vpop.f32.mrf.mxu0
    %v885 = vadd.f32 %v761, %v884
    %v886 = vpop.f32.mrf.mxu0
    %887 = vmatprep.mubr.f32.mxu0 0.0
    %888 = vmatmul.mubr.f32.gmra.mxu0 %v786
    %v889 = vpop.f32.mrf.mxu0
    %v890 = vadd.f32 %v761, %v889
    %v891 = vpop.f32.mrf.mxu0
    %892 = vdwg.mxu0
    %v893 = vxor.u32 %v855, 2147483648
    %v894 = vxor.u32 %v860, 2147483648
    %v895 = vxor.u32 %v865, 2147483648
    %v896 = vxor.u32 %v870, 2147483648
    %v897 = vxor.u32 %v875, 2147483648
    %v898 = vxor.u32 %v880, 2147483648
    %v899 = vxor.u32 %v885, 2147483648
    %v900 = vxor.u32 %v890, 2147483648
    %v901 = vmul.f32 %v893, 1.442695
    %v902 = vpow.pop %v901
    %v903 = vmul.f32 %v894, 1.442695
    %v904 = vpow.pop %v903
    %v905 = vmul.f32 %v895, 1.442695
    %v906 = vpow.pop %v905
    %v907 = vmul.f32 %v896, 1.442695
    %v908 = vpow.pop %v907
    %v909 = vmul.f32 %v897, 1.442695
    %v910 = vpow.pop %v909
    %v911 = vmul.f32 %v898, 1.442695
    %v912 = vpow.pop %v911
    %v913 = vmul.f32 %v899, 1.442695
    %v914 = vpow.pop %v913
    %v915 = vmul.f32 %v900, 1.442695
    %v916 = vpow.pop %v915
    %v917 = vadd.f32 %v902, 1.0
    %v918 = vadd.f32 %v904, 1.0
    %v919 = vadd.f32 %v906, 1.0
    %v920 = vadd.f32 %v908, 1.0
    %v921 = vadd.f32 %v910, 1.0
    %v922 = vadd.f32 %v912, 1.0
    %v923 = vadd.f32 %v914, 1.0
    %v924 = vadd.f32 %v916, 1.0
    %v925 = vrcp.pop %v917
    %v926 = vmul.f32 1.0, %v925
    %v927 = vrcp.pop %v918
    %v928 = vmul.f32 1.0, %v927
    %v929 = vrcp.pop %v919
    %v930 = vmul.f32 1.0, %v929
    %v931 = vrcp.pop %v920
    %v932 = vmul.f32 1.0, %v931
    %v933 = vrcp.pop %v921
    %v934 = vmul.f32 1.0, %v933
    %v935 = vrcp.pop %v922
    %v936 = vmul.f32 1.0, %v935
    %v937 = vrcp.pop %v923
    %v938 = vmul.f32 1.0, %v937
    %v939 = vrcp.pop %v924
    %v940 = vmul.f32 1.0, %v939
    %v941 = vmul.f32 %v855, %v926
    %v942 = vmul.f32 %v860, %v928
    %v943 = vmul.f32 %v865, %v930
    %v944 = vmul.f32 %v870, %v932
    %v945 = vmul.f32 %v875, %v934
    %v946 = vmul.f32 %v880, %v936
    %v947 = vmul.f32 %v885, %v938
    %v948 = vmul.f32 %v890, %v940
    %v949 = vld [vmem:[%s9] sm:$0x1]
    %v951 = vlaneseq
    %v952 = vshrl.u32 %v951, 7
    %v953 = vsub.s32 0, %v952
    %v954 = vrot.slane %v949, %v953
    %v956 = vmul.f32 %v941, %v954
    %v957 = vmul.f32 %v942, %v954
    %v958 = vmul.f32 %v943, %v954
    %v959 = vmul.f32 %v944, %v954
    %v960 = vmul.f32 %v945, %v954
    %v961 = vmul.f32 %v946, %v954
    %v962 = vmul.f32 %v947, %v954
    %v963 = vmul.f32 %v948, %v954
    %vm964 = vcmask 130048
    %v965 = vsel %vm964, %v956, 0.0
    %966 = vadd.xlane.f32.xlu0 %v965
    %v967 = vpop.xlane.xlu0 %966
    %v968 = vsel %vm964, %v957, 0.0
    %969 = vadd.xlane.f32.xlu0 %v968
    %v970 = vpop.xlane.xlu0 %969
    %v971 = vsel %vm964, %v958, 0.0
    %972 = vadd.xlane.f32.xlu0 %v971
    %v973 = vpop.xlane.xlu0 %972
    %v974 = vsel %vm964, %v959, 0.0
    %975 = vadd.xlane.f32.xlu0 %v974
    %v976 = vpop.xlane.xlu0 %975
    %v977 = vsel %vm964, %v960, 0.0
    %978 = vadd.xlane.f32.xlu0 %v977
    %v979 = vpop.xlane.xlu0 %978
    %v980 = vsel %vm964, %v961, 0.0
    %981 = vadd.xlane.f32.xlu0 %v980
    %v982 = vpop.xlane.xlu0 %981
    %v983 = vsel %vm964, %v962, 0.0
    %984 = vadd.xlane.f32.xlu0 %v983
    %v985 = vpop.xlane.xlu0 %984
    %v986 = vsel %vm964, %v963, 0.0
    %987 = vadd.xlane.f32.xlu0 %v986
    %v988 = vpop.xlane.xlu0 %987
    %v989 = vld [vmem:[#allocation2] sm:$0x1]
    %v991 = vlaneseq
    %v992 = vshrl.u32 %v991, 7
    %v993 = vsub.s32 0, %v992
    %v994 = vrot.slane %v989, %v993
    %v996 = vadd.f32 %v967, %v994
    %v997 = vadd.f32 %v970, %v994
    %v998 = vadd.f32 %v973, %v994
    %v999 = vadd.f32 %v976, %v994
    %v1000 = vadd.f32 %v979, %v994
    %v1001 = vadd.f32 %v982, %v994
    %v1002 = vadd.f32 %v985, %v994
    %v1003 = vadd.f32 %v988, %v994
    %1005 = vset.pattern.permute.xlu0 0
    %1006 = vperm.xlu0 %1005, %v996
    %v1007 = vpop.permute.xlu0 %1006
    %1010 = vset.pattern.permute.xlu0 0
    %1011 = vperm.xlu0 %1010, %v997
    %v1012 = vpop.permute.xlu0 %1011
    %1015 = vset.pattern.permute.xlu0 0
    %1016 = vperm.xlu0 %1015, %v998
    %v1017 = vpop.permute.xlu0 %1016
    %1020 = vset.pattern.permute.xlu0 0
    %1021 = vperm.xlu0 %1020, %v999
    %v1022 = vpop.permute.xlu0 %1021
    %1025 = vset.pattern.permute.xlu0 0
    %1026 = vperm.xlu0 %1025, %v1000
    %v1027 = vpop.permute.xlu0 %1026
    %1030 = vset.pattern.permute.xlu0 0
    %1031 = vperm.xlu0 %1030, %v1001
    %v1032 = vpop.permute.xlu0 %1031
    %1035 = vset.pattern.permute.xlu0 0
    %1036 = vperm.xlu0 %1035, %v1002
    %v1037 = vpop.permute.xlu0 %1036
    %1040 = vset.pattern.permute.xlu0 0
    %1041 = vperm.xlu0 %1040, %v1003
    %v1042 = vpop.permute.xlu0 %1041
    %v1044 = vmul.f32 %v1007, %v139
    %v1045 = vmul.f32 %v1012, %v140
    %v1046 = vmul.f32 %v1017, %v141
    %v1047 = vmul.f32 %v1022, %v142
    %v1048 = vmul.f32 %v1027, %v143
    %v1049 = vmul.f32 %v1032, %v144
    %v1050 = vmul.f32 %v1037, %v145
    %v1051 = vmul.f32 %v1042, %v146
    %v1052 = vlaneseq
    %v1053 = vshrl.u32 %v1052, 7
    %v1054 = vld [vmem:[%s0] sm:$0xff]
    %v1055 = vcombine.high %v1054, %v1054
    %v1057 = vunpack.c.l.s4 1966171168
    %v1058 = vunpack.c.0.s8 %v1057
    %v1059 = vlaneseq
    %v1060 = vshrl.u32 %v1059, 7
    %v1061 = vsub.s32 %v1058, %v1060
    %v1062 = vrot.slane %v1054, %v1061
    %v1064 = vunpack.c.l.s4 1966171168
    %v1065 = vunpack.c.0.s8 %v1064
    %v1066 = vlaneseq
    %v1067 = vshrl.u32 %v1066, 7
    %v1068 = vsub.s32 %v1065, %v1067
    %v1069 = vrot.slane %v1055, %v1068
    %v1070 = vcombine.high %v1062, %v1062
    %v1071 = vcombine.high %v1069, %v1069
    %v1073 = vunpack.c.l.s4 1966171168
    %v1074 = vunpack.c.0.s8 %v1073
    %v1075 = vlaneseq
    %v1076 = vshrl.u32 %v1075, 7
    %v1077 = vsub.s32 %v1074, %v1076
    %v1078 = vrot.slane %v1062, %v1077
    %v1080 = vunpack.c.l.s4 1966171168
    %v1081 = vunpack.c.0.s8 %v1080
    %v1082 = vlaneseq
    %v1083 = vshrl.u32 %v1082, 7
    %v1084 = vsub.s32 %v1081, %v1083
    %v1085 = vrot.slane %v1069, %v1084
    %v1087 = vunpack.c.l.s4 1966171168
    %v1088 = vunpack.c.0.s8 %v1087
    %v1089 = vlaneseq
    %v1090 = vshrl.u32 %v1089, 7
    %v1091 = vsub.s32 %v1088, %v1090
    %v1092 = vrot.slane %v1070, %v1091
    %v1094 = vunpack.c.l.s4 1966171168
    %v1095 = vunpack.c.0.s8 %v1094
    %v1096 = vlaneseq
    %v1097 = vshrl.u32 %v1096, 7
    %v1098 = vsub.s32 %v1095, %v1097
    %v1099 = vrot.slane %v1071, %v1098
    %v1100 = vcombine.high %v1078, %v1078
    %v1101 = vcombine.high %v1085, %v1085
    %v1102 = vcombine.high %v1092, %v1092
    %v1103 = vcombine.high %v1099, %v1099
    %v1104 = vlaneseq
    %v1105 = vshrl.u32 %v1104, 7
    %v1106 = vsub.s32 0, %v1105
    %v1107 = vrot.slane %v1078, %v1106
    %v1108 = vlaneseq
    %v1109 = vshrl.u32 %v1108, 7
    %v1110 = vsub.s32 0, %v1109
    %v1111 = vrot.slane %v1092, %v1110
    %v1112 = vlaneseq
    %v1113 = vshrl.u32 %v1112, 7
    %v1114 = vsub.s32 0, %v1113
    %v1115 = vrot.slane %v1100, %v1114
    %v1116 = vlaneseq
    %v1117 = vshrl.u32 %v1116, 7
    %v1118 = vsub.s32 0, %v1117
    %v1119 = vrot.slane %v1102, %v1118
    %v1120 = vlaneseq
    %v1121 = vshrl.u32 %v1120, 7
    %v1122 = vsub.s32 0, %v1121
    %v1123 = vrot.slane %v1085, %v1122
    %v1124 = vlaneseq
    %v1125 = vshrl.u32 %v1124, 7
    %v1126 = vsub.s32 0, %v1125
    %v1127 = vrot.slane %v1099, %v1126
    %v1128 = vlaneseq
    %v1129 = vshrl.u32 %v1128, 7
    %v1130 = vsub.s32 0, %v1129
    %v1131 = vrot.slane %v1101, %v1130
    %v1132 = vlaneseq
    %v1133 = vshrl.u32 %v1132, 7
    %v1134 = vsub.s32 0, %v1133
    %v1135 = vrot.slane %v1103, %v1134
    %1136 = vset.pattern.permute.xlu0 0
    %1137 = vperm.xlu0 %1136, %v1107
    %v1138 = vpop.permute.xlu0 %1137
    %1139 = vset.pattern.permute.xlu0 0
    %1140 = vperm.xlu0 %1139, %v1111
    %v1141 = vpop.permute.xlu0 %1140
    %1142 = vset.pattern.permute.xlu0 0
    %1143 = vperm.xlu0 %1142, %v1115
    %v1144 = vpop.permute.xlu0 %1143
    %1145 = vset.pattern.permute.xlu0 0
    %1146 = vperm.xlu0 %1145, %v1119
    %v1147 = vpop.permute.xlu0 %1146
    %1148 = vset.pattern.permute.xlu0 0
    %1149 = vperm.xlu0 %1148, %v1123
    %v1150 = vpop.permute.xlu0 %1149
    %1151 = vset.pattern.permute.xlu0 0
    %1152 = vperm.xlu0 %1151, %v1127
    %v1153 = vpop.permute.xlu0 %1152
    %1154 = vset.pattern.permute.xlu0 0
    %1155 = vperm.xlu0 %1154, %v1131
    %v1156 = vpop.permute.xlu0 %1155
    %1157 = vset.pattern.permute.xlu0 0
    %1158 = vperm.xlu0 %1157, %v1135
    %v1159 = vpop.permute.xlu0 %1158
    %vm1160 = vcmp.lt.s32.totalorder %v1053, %v1138
    %vm1161 = vcmp.lt.s32.totalorder %v1053, %v1141
    %vm1162 = vcmp.lt.s32.totalorder %v1053, %v1144
    %vm1163 = vcmp.lt.s32.totalorder %v1053, %v1147
    %vm1164 = vcmp.lt.s32.totalorder %v1053, %v1150
    %vm1165 = vcmp.lt.s32.totalorder %v1053, %v1153
    %vm1166 = vcmp.lt.s32.totalorder %v1053, %v1156
    %vm1167 = vcmp.lt.s32.totalorder %v1053, %v1159
    %v1168 = vsel %vm1160, %v1044, 0.0
    %v1169 = vsel %vm1161, %v1045, 0.0
    %v1170 = vsel %vm1162, %v1046, 0.0
    %v1171 = vsel %vm1163, %v1047, 0.0
    %v1172 = vsel %vm1164, %v1048, 0.0
    %v1173 = vsel %vm1165, %v1049, 0.0
    %v1174 = vsel %vm1166, %v1050, 0.0
    %v1175 = vsel %vm1167, %v1051, 0.0
    %v1176 = vsel %vm246, %v1168, 0.0
    %v1177 = vrot.slane %v1176, 4
    %v1178 = vadd.f32 %v1176, %v1177
    %v1179 = vrot.slane %v1178, 2
    %v1180 = vadd.f32 %v1178, %v1179
    %v1181 = vrot.slane %v1180, 1
    %v1182 = vadd.f32 %v1180, %v1181
    %v1183 = vsel %vm246, %v1169, 0.0
    %v1184 = vrot.slane %v1183, 4
    %v1185 = vadd.f32 %v1183, %v1184
    %v1186 = vrot.slane %v1185, 2
    %v1187 = vadd.f32 %v1185, %v1186
    %v1188 = vrot.slane %v1187, 1
    %v1189 = vadd.f32 %v1187, %v1188
    %v1190 = vsel %vm246, %v1170, 0.0
    %v1191 = vrot.slane %v1190, 4
    %v1192 = vadd.f32 %v1190, %v1191
    %v1193 = vrot.slane %v1192, 2
    %v1194 = vadd.f32 %v1192, %v1193
    %v1195 = vrot.slane %v1194, 1
    %v1196 = vadd.f32 %v1194, %v1195
    %v1197 = vsel %vm246, %v1171, 0.0
    %v1198 = vrot.slane %v1197, 4
    %v1199 = vadd.f32 %v1197, %v1198
    %v1200 = vrot.slane %v1199, 2
    %v1201 = vadd.f32 %v1199, %v1200
    %v1202 = vrot.slane %v1201, 1
    %v1203 = vadd.f32 %v1201, %v1202
    %v1204 = vsel %vm246, %v1172, 0.0
    %v1205 = vrot.slane %v1204, 4
    %v1206 = vadd.f32 %v1204, %v1205
    %v1207 = vrot.slane %v1206, 2
    %v1208 = vadd.f32 %v1206, %v1207
    %v1209 = vrot.slane %v1208, 1
    %v1210 = vadd.f32 %v1208, %v1209
    %v1211 = vsel %vm246, %v1173, 0.0
    %v1212 = vrot.slane %v1211, 4
    %v1213 = vadd.f32 %v1211, %v1212
    %v1214 = vrot.slane %v1213, 2
    %v1215 = vadd.f32 %v1213, %v1214
    %v1216 = vrot.slane %v1215, 1
    %v1217 = vadd.f32 %v1215, %v1216
    %v1218 = vsel %vm246, %v1174, 0.0
    %v1219 = vrot.slane %v1218, 4
    %v1220 = vadd.f32 %v1218, %v1219
    %v1221 = vrot.slane %v1220, 2
    %v1222 = vadd.f32 %v1220, %v1221
    %v1223 = vrot.slane %v1222, 1
    %v1224 = vadd.f32 %v1222, %v1223
    %v1225 = vsel %vm246, %v1175, 0.0
    %v1226 = vrot.slane %v1225, 4
    %v1227 = vadd.f32 %v1225, %v1226
    %v1228 = vrot.slane %v1227, 2
    %v1229 = vadd.f32 %v1227, %v1228
    %v1230 = vrot.slane %v1229, 1
    %v1231 = vadd.f32 %v1229, %v1230
    %v1232 = vld [vmem:[#allocation12] sm:$0xff]
    %v1233 = vld [vmem:[#allocation12 + $0x8] sm:$0xff]
    %v1234 = vld [vmem:[#allocation12 + $0x10] sm:$0xff]
    %v1235 = vld [vmem:[#allocation12 + $0x18] sm:$0xff]
    %v1236 = vld [vmem:[#allocation12 + $0x20] sm:$0x3]
    %v1237 = vld [vmem:[#allocation12 + $0x28] sm:$0x3]
    %v1238 = vld [vmem:[%s12] sm:$0xff]
    %v1239 = vld [vmem:[%s12 + $0x8] sm:$0xff]
    %vm1248 = vcmask 1041409
    %v1249 = vsel %vm1248, %v1189, %v1182
    %vm1250 = vcmask 1042434
    %v1251 = vsel %vm1250, %v1196, %v1249
    %vm1252 = vcmask 1043459
    %v1253 = vsel %vm1252, %v1203, %v1251
    %vm1254 = vcmask 1044484
    %v1255 = vsel %vm1254, %v1210, %v1253
    %vm1256 = vcmask 1045509
    %v1257 = vsel %vm1256, %v1217, %v1255
    %vm1258 = vcmask 1046534
    %v1259 = vsel %vm1258, %v1224, %v1257
    %vm1260 = vcmask 1047559
    %v1261 = vsel %vm1260, %v1231, %v1259
    %v1262 = vsel %vm246, %v1261, 0
    %1264 = vmatprep.subr.mxu0 0.0
    %1265 = vmatpush1.msra.mxu0 0.0
    %1266 = vmatprep.subr.mxu0 0.0
    %1267 = vmatpush1.msra.mxu0 0.0
    %1268 = vmatprep.subr.mxu0 0.0
    %1269 = vmatpush1.msra.mxu0 0.0
    %1270 = vmatprep.subr.mxu0 0.0
    %1271 = vmatpush1.msra.mxu0 0.0
    %1272 = vmatprep.subr.mxu0 0.0
    %1273 = vmatpush1.msra.mxu0 0.0
    %1274 = vmatprep.subr.mxu0 0.0
    %1275 = vmatpush1.msra.mxu0 0.0
    %1276 = vmatprep.subr.mxu0 0.0
    %1277 = vmatpush1.msra.mxu0 0.0
    %1278 = vmatprep.subr.mxu0 0.0
    %1279 = vmatpush1.msra.mxu0 0.0
    %1280 = vmatprep.subr.mxu0 0.0
    %1281 = vmatpush1.msra.mxu0 0.0
    %1282 = vmatprep.subr.mxu0 0.0
    %1283 = vmatpush1.msra.mxu0 0.0
    %1284 = vmatprep.subr.mxu0 0.0
    %1285 = vmatpush1.msra.mxu0 0.0
    %1286 = vmatprep.subr.mxu0 0.0
    %1287 = vmatpush1.msra.mxu0 0.0
    %1288 = vmatprep.subr.mxu0 0.0
    %1289 = vmatpush1.msra.mxu0 0.0
    %1290 = vmatprep.subr.mxu0 0.0
    %1291 = vmatpush1.msra.mxu0 0.0
    %1292 = vmatprep.subr.mxu0 0.0
    %1293 = vmatpush1.msra.mxu0 0.0
    %1294 = vmatprep.subr.mxu0 %v1239
    %1295 = vmatpush1.msra.mxu0 %v1238
    %1296 = vmatprep.subr.mxu0 0.0
    %1297 = vmatpush2.msra.mxu0 0.0
    %1298 = vmatprep.subr.mxu0 0.0
    %1299 = vmatpush2.msra.mxu0 0.0
    %1300 = vmatprep.subr.mxu0 0.0
    %1301 = vmatpush2.msra.mxu0 0.0
    %1302 = vmatprep.subr.mxu0 0.0
    %1303 = vmatpush2.msra.mxu0 0.0
    %1304 = vmatprep.subr.mxu0 0.0
    %1305 = vmatpush2.msra.mxu0 0.0
    %1306 = vmatprep.subr.mxu0 0.0
    %1307 = vmatpush2.msra.mxu0 0.0
    %1308 = vmatprep.subr.mxu0 0.0
    %1309 = vmatpush2.msra.mxu0 0.0
    %1310 = vmatprep.subr.mxu0 0.0
    %1311 = vmatpush2.msra.mxu0 0.0
    %1312 = vmatprep.subr.mxu0 0.0
    %1313 = vmatpush2.msra.mxu0 0.0
    %1314 = vmatprep.subr.mxu0 0.0
    %1315 = vmatpush2.msra.mxu0 0.0
    %1316 = vmatprep.subr.mxu0 0.0
    %1317 = vmatpush2.msra.mxu0 0.0
    %1318 = vmatprep.subr.mxu0 0.0
    %1319 = vmatpush2.msra.mxu0 0.0
    %1320 = vmatprep.subr.mxu0 0.0
    %1321 = vmatpush2.msra.mxu0 0.0
    %1322 = vmatprep.subr.mxu0 0.0
    %1323 = vmatpush2.msra.mxu0 0.0
    %1324 = vmatprep.subr.mxu0 0.0
    %1325 = vmatpush2.msra.mxu0 0.0
    %1326 = vmatprep.subr.mxu0 0.0
    %1327 = vmatpush2.msra.mxu0 0.0
    %1328 = vmatprep.mubr.f32.mxu0 0.0
    %1329 = vmatmul.mubr.f32.gmra.mxu0 %v1262
    %v1330 = vpop.f32.mrf.mxu0
    %v1331 = vadd.f32 0.0, %v1330
    %v1332 = vpop.f32.mrf.mxu0
    %v1333 = vadd.f32 0.0, %v1332
    %1334 = vdwg.mxu0
    %vm1335 = vcmask 146432
    %v1336 = vsel %vm1335, %v138, 0
    %vm1338 = vcmask 1041408
    %v1340 = vsel %vm1338, %v1236, 0
    %v1343 = vsel %vm1338, %v1237, 0
    %1345 = vmatprep.subr.mxu0 0.0
    %1346 = vmatpush1.msra.mxu0 0.0
    %1347 = vmatprep.subr.mxu0 0.0
    %1348 = vmatpush1.msra.mxu0 0.0
    %1349 = vmatprep.subr.mxu0 0.0
    %1350 = vmatpush1.msra.mxu0 0.0
    %1351 = vmatprep.subr.mxu0 0.0
    %1352 = vmatpush1.msra.mxu0 0.0
    %1353 = vmatprep.subr.mxu0 0.0
    %1354 = vmatpush1.msra.mxu0 0.0
    %1355 = vmatprep.subr.mxu0 0.0
    %1356 = vmatpush1.msra.mxu0 0.0
    %1357 = vmatprep.subr.mxu0 0.0
    %1358 = vmatpush1.msra.mxu0 0.0
    %1359 = vmatprep.subr.mxu0 0.0
    %1360 = vmatpush1.msra.mxu0 0.0
    %1361 = vmatprep.subr.mxu0 0.0
    %1362 = vmatpush1.msra.mxu0 0.0
    %1363 = vmatprep.subr.mxu0 0.0
    %1364 = vmatpush1.msra.mxu0 0.0
    %1365 = vmatprep.subr.mxu0 0.0
    %1366 = vmatpush1.msra.mxu0 0.0
    %1367 = vmatprep.subr.mxu0 0.0
    %1368 = vmatpush1.msra.mxu0 0.0
    %1369 = vmatprep.subr.mxu0 0.0
    %1370 = vmatpush1.msra.mxu0 0.0
    %1371 = vmatprep.subr.mxu0 %v1343
    %1372 = vmatpush1.msra.mxu0 %v1340
    %1373 = vmatprep.subr.mxu0 %v1235
    %1374 = vmatpush1.msra.mxu0 %v1234
    %1375 = vmatprep.subr.mxu0 %v1233
    %1376 = vmatpush1.msra.mxu0 %v1232
    %1377 = vmatprep.subr.mxu0 0.0
    %1378 = vmatpush2.msra.mxu0 0.0
    %1379 = vmatprep.subr.mxu0 0.0
    %1380 = vmatpush2.msra.mxu0 0.0
    %1381 = vmatprep.subr.mxu0 0.0
    %1382 = vmatpush2.msra.mxu0 0.0
    %1383 = vmatprep.subr.mxu0 0.0
    %1384 = vmatpush2.msra.mxu0 0.0
    %1385 = vmatprep.subr.mxu0 0.0
    %1386 = vmatpush2.msra.mxu0 0.0
    %1387 = vmatprep.subr.mxu0 0.0
    %1388 = vmatpush2.msra.mxu0 0.0
    %1389 = vmatprep.subr.mxu0 0.0
    %1390 = vmatpush2.msra.mxu0 0.0
    %1391 = vmatprep.subr.mxu0 0.0
    %1392 = vmatpush2.msra.mxu0 0.0
    %1393 = vmatprep.subr.mxu0 0.0
    %1394 = vmatpush2.msra.mxu0 0.0
    %1395 = vmatprep.subr.mxu0 0.0
    %1396 = vmatpush2.msra.mxu0 0.0
    %1397 = vmatprep.subr.mxu0 0.0
    %1398 = vmatpush2.msra.mxu0 0.0
    %1399 = vmatprep.subr.mxu0 0.0
    %1400 = vmatpush2.msra.mxu0 0.0
    %1401 = vmatprep.subr.mxu0 0.0
    %1402 = vmatpush2.msra.mxu0 0.0
    %1403 = vmatprep.subr.mxu0 0.0
    %1404 = vmatpush2.msra.mxu0 0.0
    %1405 = vmatprep.subr.mxu0 0.0
    %1406 = vmatpush2.msra.mxu0 0.0
    %1407 = vmatprep.subr.mxu0 0.0
    %1408 = vmatpush2.msra.mxu0 0.0
    %1409 = vmatprep.mubr.f32.mxu0 0.0
    %1410 = vmatmul.mubr.f32.gmra.mxu0 %v1336
    %v1411 = vpop.f32.mrf.mxu0
    %v1412 = vadd.f32 %v1331, %v1411
    %v1413 = vpop.f32.mrf.mxu0
    %v1414 = vadd.f32 %v1333, %v1413
    %1415 = vdwg.mxu0
    %v1416 = vld [vmem:[%s13] sm:$0x3]
    %v1418 = vlaneseq
    %v1419 = vshrl.u32 %v1418, 7
    %v1420 = vsub.s32 0, %v1419
    %v1421 = vrot.slane %v1416, %v1420
    %v1422 = vlaneseq
    %v1423 = vshrl.u32 %v1422, 7
    %v1424 = vsub.s32 1, %v1423
    %v1425 = vrot.slane %v1416, %v1424
    %v1428 = vadd.f32 %v1412, %v1421
    %v1429 = vadd.f32 %v1414, %v1425
    %v1430 = vmax.f32 %v1428, 0.0
    %v1431 = vmax.f32 %v1429, 0.0
    %v1432 = vld [vmem:[#allocation13] sm:$0xff]
    %v1433 = vld [vmem:[#allocation13 + $0x8] sm:$0xff]
    %v1434 = vld [vmem:[#allocation13 + $0x10] sm:$0xff]
    %v1435 = vld [vmem:[#allocation13 + $0x18] sm:$0xff]
    %v1436 = vld [vmem:[#allocation13 + $0x20] sm:$0xff]
    %v1437 = vld [vmem:[#allocation13 + $0x28] sm:$0xff]
    %v1438 = vld [vmem:[#allocation13 + $0x30] sm:$0xff]
    %v1439 = vld [vmem:[#allocation13 + $0x38] sm:$0xff]
    %v1440 = vld [vmem:[#allocation13 + $0x40] sm:$0xff]
    %v1441 = vld [vmem:[#allocation13 + $0x48] sm:$0xff]
    %v1442 = vld [vmem:[#allocation13 + $0x50] sm:$0xff]
    %v1443 = vld [vmem:[#allocation13 + $0x58] sm:$0xff]
    %v1444 = vld [vmem:[#allocation13 + $0x60] sm:$0xff]
    %v1445 = vld [vmem:[#allocation13 + $0x68] sm:$0xff]
    %v1446 = vld [vmem:[#allocation13 + $0x70] sm:$0xff]
    %v1447 = vld [vmem:[#allocation13 + $0x78] sm:$0xff]
    %v1448 = vld [vmem:[#allocation13 + $0x80] sm:$0xff]
    %v1449 = vld [vmem:[#allocation13 + $0x88] sm:$0xff]
    %v1450 = vld [vmem:[#allocation13 + $0x90] sm:$0xff]
    %v1451 = vld [vmem:[#allocation13 + $0x98] sm:$0xff]
    %v1452 = vld [vmem:[#allocation13 + $0xa0] sm:$0xff]
    %v1453 = vld [vmem:[#allocation13 + $0xa8] sm:$0xff]
    %v1454 = vld [vmem:[#allocation13 + $0xb0] sm:$0xff]
    %v1455 = vld [vmem:[#allocation13 + $0xb8] sm:$0xff]
    %v1456 = vld [vmem:[#allocation13 + $0xc0] sm:$0xff]
    %v1457 = vld [vmem:[#allocation13 + $0xc8] sm:$0xff]
    %v1458 = vld [vmem:[#allocation13 + $0xd0] sm:$0xff]
    %v1459 = vld [vmem:[#allocation13 + $0xd8] sm:$0xff]
    %v1460 = vld [vmem:[#allocation13 + $0xe0] sm:$0xff]
    %v1461 = vld [vmem:[#allocation13 + $0xe8] sm:$0xff]
    %v1462 = vld [vmem:[#allocation13 + $0xf0] sm:$0xff]
    %v1463 = vld [vmem:[#allocation13 + $0xf8] sm:$0xff]
    %v1464 = vld [vmem:[%s15] sm:$0x1]
    %v1466 = vlaneseq
    %v1467 = vshrl.u32 %v1466, 7
    %v1468 = vsub.s32 0, %v1467
    %v1469 = vrot.slane %v1464, %v1468
    %1471 = vmatprep.subr.mxu0 0.0
    %1472 = vmatpush1.msra.mxu0 %v1447
    %1473 = vmatprep.subr.mxu0 0.0
    %1474 = vmatpush1.msra.mxu0 %v1446
    %1475 = vmatprep.subr.mxu0 0.0
    %1476 = vmatpush1.msra.mxu0 %v1445
    %1477 = vmatprep.subr.mxu0 0.0
    %1478 = vmatpush1.msra.mxu0 %v1444
    %1479 = vmatprep.subr.mxu0 0.0
    %1480 = vmatpush1.msra.mxu0 %v1443
    %1481 = vmatprep.subr.mxu0 0.0
    %1482 = vmatpush1.msra.mxu0 %v1442
    %1483 = vmatprep.subr.mxu0 0.0
    %1484 = vmatpush1.msra.mxu0 %v1441
    %1485 = vmatprep.subr.mxu0 0.0
    %1486 = vmatpush1.msra.mxu0 %v1440
    %1487 = vmatprep.subr.mxu0 0.0
    %1488 = vmatpush1.msra.mxu0 %v1439
    %1489 = vmatprep.subr.mxu0 0.0
    %1490 = vmatpush1.msra.mxu0 %v1438
    %1491 = vmatprep.subr.mxu0 0.0
    %1492 = vmatpush1.msra.mxu0 %v1437
    %1493 = vmatprep.subr.mxu0 0.0
    %1494 = vmatpush1.msra.mxu0 %v1436
    %1495 = vmatprep.subr.mxu0 0.0
    %1496 = vmatpush1.msra.mxu0 %v1435
    %1497 = vmatprep.subr.mxu0 0.0
    %1498 = vmatpush1.msra.mxu0 %v1434
    %1499 = vmatprep.subr.mxu0 0.0
    %1500 = vmatpush1.msra.mxu0 %v1433
    %1501 = vmatprep.subr.mxu0 0.0
    %1502 = vmatpush1.msra.mxu0 %v1432
    %1503 = vmatprep.subr.mxu0 0.0
    %1504 = vmatpush2.msra.mxu0 %v1463
    %1505 = vmatprep.subr.mxu0 0.0
    %1506 = vmatpush2.msra.mxu0 %v1462
    %1507 = vmatprep.subr.mxu0 0.0
    %1508 = vmatpush2.msra.mxu0 %v1461
    %1509 = vmatprep.subr.mxu0 0.0
    %1510 = vmatpush2.msra.mxu0 %v1460
    %1511 = vmatprep.subr.mxu0 0.0
    %1512 = vmatpush2.msra.mxu0 %v1459
    %1513 = vmatprep.subr.mxu0 0.0
    %1514 = vmatpush2.msra.mxu0 %v1458
    %1515 = vmatprep.subr.mxu0 0.0
    %1516 = vmatpush2.msra.mxu0 %v1457
    %1517 = vmatprep.subr.mxu0 0.0
    %1518 = vmatpush2.msra.mxu0 %v1456
    %1519 = vmatprep.subr.mxu0 0.0
    %1520 = vmatpush2.msra.mxu0 %v1455
    %1521 = vmatprep.subr.mxu0 0.0
    %1522 = vmatpush2.msra.mxu0 %v1454
    %1523 = vmatprep.subr.mxu0 0.0
    %1524 = vmatpush2.msra.mxu0 %v1453
    %1525 = vmatprep.subr.mxu0 0.0
    %1526 = vmatpush2.msra.mxu0 %v1452
    %1527 = vmatprep.subr.mxu0 0.0
    %1528 = vmatpush2.msra.mxu0 %v1451
    %1529 = vmatprep.subr.mxu0 0.0
    %1530 = vmatpush2.msra.mxu0 %v1450
    %1531 = vmatprep.subr.mxu0 0.0
    %1532 = vmatpush2.msra.mxu0 %v1449
    %1533 = vmatprep.subr.mxu0 0.0
    %1534 = vmatpush2.msra.mxu0 %v1448
    %1535 = vmatprep.mubr.f32.mxu0 %v1431
    %1536 = vmatmul.mubr.f32.gmra.mxu0 %v1430
    %v1537 = vpop.f32.mrf.mxu0
    %v1538 = vadd.f32 %v1469, %v1537
    %v1539 = vpop.f32.mrf.mxu0
    %1540 = vdwg.mxu0
    %v1541 = vmax.f32 %v1538, 0.0
    %v1542 = vld [vmem:[%s16] sm:$0x1]
    %v1544 = vlaneseq
    %v1545 = vshrl.u32 %v1544, 7
    %v1546 = vsub.s32 0, %v1545
    %v1547 = vrot.slane %v1542, %v1546
    %v1549 = vmul.f32 %v1541, %v1547
    %1550 = vadd.xlane.f32.xlu0 %v1549
    %v1551 = vpop.xlane.xlu0 %1550
    %v1552 = vld [vmem:[#allocation3] sm:$0x1]
    %v1554 = vlaneseq
    %v1555 = vshrl.u32 %v1554, 7
    %v1556 = vsub.s32 0, %v1555
    %v1557 = vrot.slane %v1552, %v1556
    %v1559 = vadd.f32 %v1551, %v1557
    %v1560 = vxor.u32 %v1559, 2147483648
    %v1561 = vmul.f32 %v1560, 1.442695
    %v1562 = vpow.pop %v1561
    %v1563 = vadd.f32 %v1562, 1.0
    %v1564 = vrcp.pop %v1563
    %v1565 = vmul.f32 1.0, %v1564
    %1566 = vxpose.xlu0.b32.start [1/16] %v1565, 128
    %1567 = vxpose.xlu0.b32.cont [2/16] 0.0, 128
    %1568 = vxpose.xlu0.b32.cont [3/16] 0.0, 128
    %1569 = vxpose.xlu0.b32.cont [4/16] 0.0, 128
    %1570 = vxpose.xlu0.b32.cont [5/16] 0.0, 128
    %1571 = vxpose.xlu0.b32.cont [6/16] 0.0, 128
    %1572 = vxpose.xlu0.b32.cont [7/16] 0.0, 128
    %1573 = vxpose.xlu0.b32.cont [8/16] 0.0, 128
    %1574 = vxpose.xlu0.b32.cont [9/16] 0.0, 128
    %1575 = vxpose.xlu0.b32.cont [10/16] 0.0, 128
    %1576 = vxpose.xlu0.b32.cont [11/16] 0.0, 128
    %1577 = vxpose.xlu0.b32.cont [12/16] 0.0, 128
    %1578 = vxpose.xlu0.b32.cont [13/16] 0.0, 128
    %1579 = vxpose.xlu0.b32.cont [14/16] 0.0, 128
    %1580 = vxpose.xlu0.b32.cont [15/16] 0.0, 128
    %1581 = vxpose.xlu0.b32.end [16/16] 0.0, 128
    %v1582 = vpop.trf.xlu0
    %v1583 = vpop.trf.xlu0
    %v1584 = vpop.trf.xlu0
    %v1585 = vpop.trf.xlu0
    %v1586 = vpop.trf.xlu0
    %v1587 = vpop.trf.xlu0
    %v1588 = vpop.trf.xlu0
    %v1589 = vpop.trf.xlu0
    %v1590 = vpop.trf.xlu0
    %v1591 = vpop.trf.xlu0
    %v1592 = vpop.trf.xlu0
    %v1593 = vpop.trf.xlu0
    %v1594 = vpop.trf.xlu0
    %v1595 = vpop.trf.xlu0
    %v1596 = vpop.trf.xlu0
    %v1597 = vpop.trf.xlu0
    %v1598 = vlaneseq
    %v1599 = vshrl.u32 %v1598, 7
    %v1600 = vsub.s32 0, %v1599
    %v1601 = vrot.slane %v1582, %v1600
    %1602 = vst.msk [vmem:[#allocation15] sm:$0xff] %vm246, %v1601
    // Predicated region
    $region98: #{tpu_custom_call.1} parent=1 // pred_check
      _
    $region99: #{tpu_custom_call.1} parent=1 // pred_check_branch
      %1604 = sbr.rel (0) target = $region101
    $region100: #{tpu_custom_call.1} parent=1 // pred_region
      %s1606 = ssub.s32 128, 128
      %1607 = vsyncadd [#allocation6], %s1606
      %s1609 = sshll.u32 [#allocation15], 4
      %s1610 = int_to_ptr.vmem [resolvable:$true] %s1609
      %1612 = dma.vmem_to_hbm [thread:$0]  %s1610, 128, %s18, [#allocation6]
    $region101: #{tpu_custom_call.1} parent=1 // pred_fallthru
      _
    // Predicated region
    $region102: #{tpu_custom_call.1} parent=1 // pred_check
      _
    $region103: #{tpu_custom_call.1} parent=1 // pred_check_branch
      %1614 = sbr.rel (0) target = $region105
    $region104: #{tpu_custom_call.1} parent=1 // pred_region
      %1615 = dma.done [#allocation6], 128
    $region105: #{tpu_custom_call.1} parent=1 // pred_fallthru
      _
    %1616 = vsyncpa [#allocation5], 1
    %1617 = vsyncpa [#allocation8], 1
    %1618 = vsyncpa [#allocation11], 1
    %1619 = vsyncpa [#allocation14], 1
    %1620 = vsyncpa [#allocation6], 1

</llo_original>
